<compile_context>
chip_gen: v7x
topology: tpu7x:2x2x1
jax: 0.10.0
libtpu: 0.0.40
codegen_flags: <defaults>
</compile_context>

<pallas_src>
import functools
import math

import jax
import jax.numpy as jnp
from jax.experimental import pallas as pl
from jax.experimental.pallas import tpu as pltpu

# ----- small, fixed config (CpmBeeConfig analogue) -----
B = 2        # batch
S = 8        # seq_len
D = 32       # hidden_size
H = 4        # num_attention_heads
DH = 8       # dim_head
FF = 64      # dim_ff
EPS = 1e-6   # rms-norm eps
RES_SCALE = 1.0 / 1.05

N = B * S          # flattened token count
HD = H * DH        # attention inner width
BIG_NEG = 1e9      # finite "minus infinity": exp(-1e9) underflows to exactly 0 in f32


def _erf(x):
    # erf via Abramowitz–Stegun 7.1.26 (max abs err ~1.5e-7 ≈ fp32 eps).
    # Implements torch.nn.GELU() (exact, erf-based) without relying on lax.erf
    # lowering inside Mosaic.
    a1, a2, a3, a4, a5 = 0.254829592, -0.284496736, 1.421413741, -1.453152027, 1.061405429
    p = 0.3275911
    s = jnp.where(x >= 0.0, 1.0, -1.0)
    ax = jnp.abs(x)
    t = 1.0 / (1.0 + p * ax)
    poly = ((((a5 * t + a4) * t + a3) * t + a2) * t + a1) * t
    return s * (1.0 - poly * jnp.exp(-ax * ax))


def _gelu_exact(x):
    return 0.5 * x * (1.0 + _erf(x * (1.0 / math.sqrt(2.0))))


# ---------------------------------------------------------------------------
# Fused kernel: RMSNorm -> attention -> residual -> RMSNorm -> FFN -> residual
# (whole (B, S, D) problem resident in VMEM; everything operates on the
#  flattened (B*S, D) token matrix)
# ---------------------------------------------------------------------------
def fused_block_kernel(h_ref, bias_ref, ln_ref, wqkv_ref, w01_ref, wproj_ref, out_ref):
    x = h_ref[...].reshape(N, D).astype(jnp.float32)              # (16, 32)
    lnw = ln_ref[...]                                             # (2, 32)
    wproj = wproj_ref[...]                                        # (96, 32)  Wo|Wout

    # ---- CpmBeeLayerNorm (RMSNorm) #1 ----
    var = jnp.mean(x * x, axis=-1, keepdims=True)
    xn = x * jax.lax.rsqrt(var + EPS) * lnw[0:1, :]

    # ---- fused QKV projection (constant scales pre-folded): one MXU push ----
    qkv = jnp.dot(xn, wqkv_ref[...], preferred_element_type=jnp.float32)   # (16, 96)
    q = qkv[:, 0:HD]
    k = qkv[:, HD:2 * HD]
    v = qkv[:, 2 * HD:3 * HD]

    bias = bias_ref[...]                                          # (H, 16, 16) additive

    # ---- attention: per-head 2-D MXU dots on the flattened token axis ----
    # Cross-batch and masked pairs carry -1e9 in `bias`, so exp() is exactly 0
    # and the softmax matches the per-batch reference bit-for-bit (causal mask
    # guarantees >=1 live key per row).
    # TODO(synk): collapse the H loop into one 'bqhd,bkhd->bhqk' contraction
    # once multi-batch-dim dot_general lowering is guaranteed in Mosaic.
    ctx_heads = []
    for hh in range(H):
        sl = slice(hh * DH, (hh + 1) * DH)
        qh, kh, vh = q[:, sl], k[:, sl], v[:, sl]                 # (16, 8) each
        sc = jnp.einsum('qd,kd->qk', qh, kh,
                        preferred_element_type=jnp.float32)       # (16, 16)
        sc = sc + bias[hh]
        m = jnp.max(sc, axis=-1, keepdims=True)
        p = jnp.exp(sc - m)
        denom = jnp.sum(p, axis=-1, keepdims=True)
        p = p * pl.reciprocal(denom, approx=False)                # exact: 2e-4 tolerance
        ctx_heads.append(jnp.dot(p, vh, preferred_element_type=jnp.float32))   # (16, 8)

    # ---- single output projection, hoisted out of the head loop ----
    ctx = jnp.concatenate(ctx_heads, axis=-1)                     # (16, 32)
    proj = jnp.dot(ctx, wproj[0:HD, :], preferred_element_type=jnp.float32)
    x = (x + proj) * RES_SCALE

    # ---- CpmBeeLayerNorm (RMSNorm) #2 + gated-GELU FFN (W0|W1 fused) ----
    var2 = jnp.mean(x * x, axis=-1, keepdims=True)
    xn2 = x * jax.lax.rsqrt(var2 + EPS) * lnw[1:2, :]
    g01 = jnp.dot(xn2, w01_ref[...], preferred_element_type=jnp.float32)   # (16, 128) lane-dense
    gh = _gelu_exact(g01[:, 0:FF]) * g01[:, FF:2 * FF]
    o = jnp.dot(gh, wproj[HD:HD + FF, :], preferred_element_type=jnp.float32)
    x = (x + o) * RES_SCALE

    out_ref[...] = x.reshape(B, S, D).astype(out_ref.dtype)


# ---------------------------------------------------------------------------
# One-time host-side parameter prep: fold scales, fuse QKV / W0|W1, pack the
# small weights so the kernel has only 6 inputs.
# ---------------------------------------------------------------------------
def pack_params(params):
    inv_d = 1.0 / math.sqrt(D)
    wqkv = jnp.concatenate([params["wq"] * (inv_d / math.sqrt(DH)),   # 1/sqrt(D)*1/sqrt(DH)
                            params["wk"] * inv_d,
                            params["wv"] * inv_d], axis=1)            # (32, 96)
    w01 = jnp.concatenate([params["w0"] * inv_d,
                           params["w1"] * inv_d], axis=1)             # (32, 128)
    wproj = jnp.concatenate([params["wo"] * (1.0 / math.sqrt(HD)),
                             params["wout"] * (1.0 / math.sqrt(FF))], axis=0)   # (96, 32)
    ln = jnp.concatenate([params["ln_att"], params["ln_ffn"]], axis=0)          # (2, 32)
    return {"ln": ln, "wqkv": wqkv, "w01": w01, "wproj": wproj}


def build_attention_bias(pos_bias, mask_f):
    """Fold position bias + {0,1} attention mask + cross-batch block mask into
    one finite additive bias over the flattened (B*S) token axis."""
    within = pos_bias[None] + (mask_f[:, None] - 1.0) * BIG_NEG      # (B, H, S, S)
    bias = jnp.full((H, N, N), -BIG_NEG, dtype=jnp.float32)
    for b in range(B):
        bias = bias.at[:, b * S:(b + 1) * S, b * S:(b + 1) * S].set(within[b])
    return bias


# ---------------------------------------------------------------------------
# Wrapper
# ---------------------------------------------------------------------------
@functools.partial(jax.jit, donate_argnums=(0,))
def _fused_block_call(hidden, bias, ln, wqkv, w01, wproj):
    return pl.pallas_call(
        fused_block_kernel,
        out_shape=jax.ShapeDtypeStruct((B, S, D), jnp.float32),
        grid=(1,),   # single invocation: whole problem (<64 KiB) lives in VMEM
        in_specs=[
            pl.BlockSpec((B, S, D), lambda i: (0, 0, 0)),      # hidden
            pl.BlockSpec((H, N, N), lambda i: (0, 0, 0)),      # additive bias (mask+pos bias)
            pl.BlockSpec((2, D), lambda i: (0, 0)),            # ln_att | ln_ffn
            pl.BlockSpec((D, 3 * HD), lambda i: (0, 0)),       # Wq|Wk|Wv  (pre-scaled)
            pl.BlockSpec((D, 2 * FF), lambda i: (0, 0)),       # W0|W1     (pre-scaled)
            pl.BlockSpec((HD + FF, D), lambda i: (0, 0)),      # Wo|Wout   (pre-scaled)
        ],
        out_specs=pl.BlockSpec((B, S, D), lambda i: (0, 0, 0)),
        input_output_aliases={0: 0},                            # hidden buffer reused for output
        compiler_params=pltpu.CompilerParams(dimension_semantics=("arbitrary",)),
        # NOTE(scaling): at real CpmBee dims use grid=(tiles,) + ("parallel",)
        # to feed the 2nd v7x TensorCore, pl.Buffered(1) for the grid-invariant
        # weight specs, a flash-style KV loop instead of full (H,N,N) scores,
        # and an explicit vmem_limit_bytes sized against v7x's 64 MiB.
    )(hidden, bias, ln, wqkv, w01, wproj)


def cpmbee_transformer_block(hidden, bias, packed):
    """Mirrors CpmBeeTransformerBlock.forward with output_attentions=False,
    past_key_values=None, use_cache=False -> returns (hidden, None, None)."""
    out = _fused_block_call(hidden, bias, packed["ln"], packed["wqkv"],
                            packed["w01"], packed["wproj"])
    return out, None, None


# ---------------------------------------------------------------------------
# Pure-JAX reference (uses the RAW, unfolded parameters)
# ---------------------------------------------------------------------------
def ref_forward(hidden, mask_b, pos_bias, p):
    def rms(x, w):
        var = jnp.mean(x.astype(jnp.float32) ** 2, axis=-1, keepdims=True)
        return x * jax.lax.rsqrt(var + EPS) * w

    x = hidden
    # self-attention block
    xn = rms(x, p["ln_att"][0])
    q = (xn @ p["wq"]) / math.sqrt(D)
    k = (xn @ p["wk"]) / math.sqrt(D)
    v = (xn @ p["wv"]) / math.sqrt(D)
    q = q.reshape(B, S, H, DH).transpose(0, 2, 1, 3)
    k = k.reshape(B, S, H, DH).transpose(0, 2, 1, 3)
    v = v.reshape(B, S, H, DH).transpose(0, 2, 1, 3)
    sc = jnp.einsum("bhqd,bhkd->bhqk", q, k) / math.sqrt(DH) + pos_bias[None]
    sc = jnp.where(mask_b[:, None], sc, -jnp.inf)
    sc = jax.nn.softmax(sc, axis=-1)
    sc = jnp.where(mask_b[:, None], sc, 0.0)
    o = jnp.einsum("bhqk,bhkd->bhqd", sc, v)
    o = o.transpose(0, 2, 1, 3).reshape(B, S, HD)
    o = (o @ p["wo"]) / math.sqrt(HD)
    x = (x + o) / 1.05
    # ffn block
    xn = rms(x, p["ln_ffn"][0])
    g = jax.nn.gelu((xn @ p["w0"]) / math.sqrt(D), approximate=False)
    h1 = (xn @ p["w1"]) / math.sqrt(D)
    o = ((g * h1) @ p["wout"]) / math.sqrt(FF)
    x = (x + o) / 1.05
    return x


if __name__ == "__main__":
    key = jax.random.PRNGKey(0)
    ks = jax.random.split(key, 11)

    hidden = jax.random.normal(ks[0], (B, S, D), dtype=jnp.float32)
    pos_bias = 0.1 * jax.random.normal(ks[1], (H, S, S), dtype=jnp.float32)
    # causal attention mask
    mask_b = jnp.tril(jnp.ones((S, S), dtype=bool))[None].repeat(B, axis=0)
    mask_f = mask_b.astype(jnp.float32)

    params = {
        # weights stored pre-transposed as (dim_in, dim_out)
        "ln_att": 1.0 + 0.1 * jax.random.normal(ks[2], (1, D), dtype=jnp.float32),
        "wq": 0.05 * jax.random.normal(ks[3], (D, HD), dtype=jnp.float32),
        "wk": 0.05 * jax.random.normal(ks[4], (D, HD), dtype=jnp.float32),
        "wv": 0.05 * jax.random.normal(ks[5], (D, HD), dtype=jnp.float32),
        "wo": 0.05 * jax.random.normal(ks[6], (HD, D), dtype=jnp.float32),
        "ln_ffn": 1.0 + 0.1 * jax.random.normal(ks[7], (1, D), dtype=jnp.float32),
        "w0": 0.05 * jax.random.normal(ks[8], (D, FF), dtype=jnp.float32),
        "w1": 0.05 * jax.random.normal(ks[9], (D, FF), dtype=jnp.float32),
        "wout": 0.05 * jax.random.normal(ks[10], (FF, D), dtype=jnp.float32),
    }

    # reference FIRST: `hidden` is donated to the fused kernel's output buffer.
    ref = ref_forward(hidden, mask_b, pos_bias, params)

    packed = pack_params(params)                       # one-time weight prep
    bias = build_attention_bias(pos_bias, mask_f)      # mask + pos-bias fold

    out, attn_w, past_kv = cpmbee_transformer_block(hidden, bias, packed)
    out = jax.block_until_ready(out)

    assert out.shape == (B, S, D)
    assert bool(jnp.allclose(out, ref, atol=2e-4, rtol=2e-4)), "mismatch vs reference"

    # TODO(synk): config.mask_att / mask_ffn gating and the use_cache=True path
    # (returning per-layer (key, value)) are not wired through the fused kernel.
    print("KERNEL_OK")
</pallas_src>

<mosaic_0001>
module attributes {stable_mosaic.version = 11 : i64} {
  func.func @fused_block_kernel(%arg0: i32, %arg1: memref<2x8x32xf32, #tpu.memory_space<vmem>>, %arg2: memref<4x16x16xf32, #tpu.memory_space<vmem>>, %arg3: memref<2x32xf32, #tpu.memory_space<vmem>>, %arg4: memref<32x96xf32, #tpu.memory_space<vmem>>, %arg5: memref<32x128xf32, #tpu.memory_space<vmem>>, %arg6: memref<96x32xf32, #tpu.memory_space<vmem>>, %arg7: memref<2x8x32xf32, #tpu.memory_space<vmem>>) attributes {dimension_semantics = [#tpu.dimension_semantics<arbitrary>], iteration_bounds = array<i64: 1>, scalar_prefetch = 0 : i64, scratch_operands = 0 : i64, tpu.core_type = #tpu.core_type<tc>, window_params = [{pipeline_mode = #tpu.pipeline_mode<synchronous>, transform_indices = @transform_0, window_bounds = array<i64: 2, 8, 32>}, {pipeline_mode = #tpu.pipeline_mode<synchronous>, transform_indices = @transform_1, window_bounds = array<i64: 4, 16, 16>}, {pipeline_mode = #tpu.pipeline_mode<synchronous>, transform_indices = @transform_2, window_bounds = array<i64: 2, 32>}, {pipeline_mode = #tpu.pipeline_mode<synchronous>, transform_indices = @transform_3, window_bounds = array<i64: 32, 96>}, {pipeline_mode = #tpu.pipeline_mode<synchronous>, transform_indices = @transform_4, window_bounds = array<i64: 32, 128>}, {pipeline_mode = #tpu.pipeline_mode<synchronous>, transform_indices = @transform_5, window_bounds = array<i64: 96, 32>}, {pipeline_mode = #tpu.pipeline_mode<synchronous>, transform_indices = @transform_6, window_bounds = array<i64: 2, 8, 32>}]} {
    %c0 = arith.constant 0 : index
    %c0_0 = arith.constant 0 : index
    %c0_1 = arith.constant 0 : index
    %0 = vector.load %arg1[%c0, %c0_0, %c0_1] : memref<2x8x32xf32, #tpu.memory_space<vmem>>, vector<2x8x32xf32>
    %1 = vector.shape_cast %0 : vector<2x8x32xf32> to vector<16x32xf32>
    %c0_2 = arith.constant 0 : index
    %c0_3 = arith.constant 0 : index
    %2 = vector.load %arg3[%c0_2, %c0_3] : memref<2x32xf32, #tpu.memory_space<vmem>>, vector<2x32xf32>
    %c0_4 = arith.constant 0 : index
    %c0_5 = arith.constant 0 : index
    %3 = vector.load %arg6[%c0_4, %c0_5] : memref<96x32xf32, #tpu.memory_space<vmem>>, vector<96x32xf32>
    %4 = arith.mulf %1, %1 : vector<16x32xf32>
    %cst = arith.constant dense<0.000000e+00> : vector<16xf32>
    %5 = vector.multi_reduction <add>, %4, %cst [1] : vector<16x32xf32> to vector<16xf32>
    %6 = vector.shape_cast %5 : vector<16xf32> to vector<16x1xf32>
    %cst_6 = arith.constant 3.200000e+01 : f32
    %7 = vector.broadcast %cst_6 : f32 to vector<16x1xf32>
    %8 = arith.divf %6, %7 : vector<16x1xf32>
    %cst_7 = arith.constant 9.99999997E-7 : f32
    %9 = vector.broadcast %cst_7 : f32 to vector<16x1xf32>
    %10 = arith.addf %8, %9 : vector<16x1xf32>
    %11 = math.rsqrt %10 : vector<16x1xf32>
    %12 = vector.broadcast %11 : vector<16x1xf32> to vector<16x32xf32>
    %13 = arith.mulf %1, %12 : vector<16x32xf32>
    %14 = vector.extract_strided_slice %2 {offsets = [0, 0], sizes = [1, 32], strides = [1, 1]} : vector<2x32xf32> to vector<1x32xf32>
    %15 = vector.broadcast %14 : vector<1x32xf32> to vector<16x32xf32>
    %16 = arith.mulf %13, %15 : vector<16x32xf32>
    %c0_8 = arith.constant 0 : index
    %c0_9 = arith.constant 0 : index
    %17 = vector.load %arg4[%c0_8, %c0_9] : memref<32x96xf32, #tpu.memory_space<vmem>>, vector<32x96xf32>
    %cst_10 = arith.constant dense<0.000000e+00> : vector<16x96xf32>
    %18 = tpu.matmul %16, %17, %cst_10 {dimension_numbers = #tpu.dot_dimension_numbers<[1], [0], [0], [1], [0, 0, 1, 1], [], []>} : vector<16x32xf32>, vector<32x96xf32>, vector<16x96xf32> -> vector<16x96xf32>
    %19 = vector.extract_strided_slice %18 {offsets = [0, 0], sizes = [16, 32], strides = [1, 1]} : vector<16x96xf32> to vector<16x32xf32>
    %20 = vector.extract_strided_slice %18 {offsets = [0, 32], sizes = [16, 32], strides = [1, 1]} : vector<16x96xf32> to vector<16x32xf32>
    %21 = vector.extract_strided_slice %18 {offsets = [0, 64], sizes = [16, 32], strides = [1, 1]} : vector<16x96xf32> to vector<16x32xf32>
    %c0_11 = arith.constant 0 : index
    %c0_12 = arith.constant 0 : index
    %c0_13 = arith.constant 0 : index
    %22 = vector.load %arg2[%c0_11, %c0_12, %c0_13] : memref<4x16x16xf32, #tpu.memory_space<vmem>>, vector<4x16x16xf32>
    %23 = vector.extract_strided_slice %19 {offsets = [0, 0], sizes = [16, 8], strides = [1, 1]} : vector<16x32xf32> to vector<16x8xf32>
    %24 = vector.extract_strided_slice %20 {offsets = [0, 0], sizes = [16, 8], strides = [1, 1]} : vector<16x32xf32> to vector<16x8xf32>
    %25 = vector.extract_strided_slice %21 {offsets = [0, 0], sizes = [16, 8], strides = [1, 1]} : vector<16x32xf32> to vector<16x8xf32>
    "tpu.trace_start"() <{level = 10 : i32, message = "qd,kd->qk"}> : () -> ()
    %cst_14 = arith.constant dense<0.000000e+00> : vector<16x16xf32>
    %26 = tpu.matmul %23, %24, %cst_14 {dimension_numbers = #tpu.dot_dimension_numbers<[1], [1], [0], [0], [0, 0, 1, 0], [], []>} : vector<16x8xf32>, vector<16x8xf32>, vector<16x16xf32> -> vector<16x16xf32>
    "tpu.trace_stop"() : () -> ()
    %27 = vector.extract_strided_slice %22 {offsets = [0, 0, 0], sizes = [1, 16, 16], strides = [1, 1, 1]} : vector<4x16x16xf32> to vector<1x16x16xf32>
    %28 = vector.shape_cast %27 : vector<1x16x16xf32> to vector<16x16xf32>
    %29 = arith.addf %26, %28 : vector<16x16xf32>
    %cst_15 = arith.constant dense<0xFF800000> : vector<16xf32>
    %30 = vector.multi_reduction <maximumf>, %29, %cst_15 [1] : vector<16x16xf32> to vector<16xf32>
    %31 = vector.shape_cast %30 : vector<16xf32> to vector<16x1xf32>
    %32 = vector.broadcast %31 : vector<16x1xf32> to vector<16x16xf32>
    %33 = arith.subf %29, %32 : vector<16x16xf32>
    %34 = math.exp %33 : vector<16x16xf32>
    %cst_16 = arith.constant dense<0.000000e+00> : vector<16xf32>
    %35 = vector.multi_reduction <add>, %34, %cst_16 [1] : vector<16x16xf32> to vector<16xf32>
    %36 = vector.shape_cast %35 : vector<16xf32> to vector<16x1xf32>
    %37 = tpu.reciprocal %36 : vector<16x1xf32> -> vector<16x1xf32>
    %38 = vector.broadcast %37 : vector<16x1xf32> to vector<16x16xf32>
    %39 = arith.mulf %34, %38 : vector<16x16xf32>
    %cst_17 = arith.constant dense<0.000000e+00> : vector<16x8xf32>
    %40 = tpu.matmul %39, %25, %cst_17 {dimension_numbers = #tpu.dot_dimension_numbers<[1], [0], [0], [1], [0, 0, 1, 1], [], []>} : vector<16x16xf32>, vector<16x8xf32>, vector<16x8xf32> -> vector<16x8xf32>
    %41 = vector.extract_strided_slice %19 {offsets = [0, 8], sizes = [16, 8], strides = [1, 1]} : vector<16x32xf32> to vector<16x8xf32>
    %42 = vector.extract_strided_slice %20 {offsets = [0, 8], sizes = [16, 8], strides = [1, 1]} : vector<16x32xf32> to vector<16x8xf32>
    %43 = vector.extract_strided_slice %21 {offsets = [0, 8], sizes = [16, 8], strides = [1, 1]} : vector<16x32xf32> to vector<16x8xf32>
    "tpu.trace_start"() <{level = 10 : i32, message = "qd,kd->qk"}> : () -> ()
    %cst_18 = arith.constant dense<0.000000e+00> : vector<16x16xf32>
    %44 = tpu.matmul %41, %42, %cst_18 {dimension_numbers = #tpu.dot_dimension_numbers<[1], [1], [0], [0], [0, 0, 1, 0], [], []>} : vector<16x8xf32>, vector<16x8xf32>, vector<16x16xf32> -> vector<16x16xf32>
    "tpu.trace_stop"() : () -> ()
    %45 = vector.extract_strided_slice %22 {offsets = [1, 0, 0], sizes = [1, 16, 16], strides = [1, 1, 1]} : vector<4x16x16xf32> to vector<1x16x16xf32>
    %46 = vector.shape_cast %45 : vector<1x16x16xf32> to vector<16x16xf32>
    %47 = arith.addf %44, %46 : vector<16x16xf32>
    %cst_19 = arith.constant dense<0xFF800000> : vector<16xf32>
    %48 = vector.multi_reduction <maximumf>, %47, %cst_19 [1] : vector<16x16xf32> to vector<16xf32>
    %49 = vector.shape_cast %48 : vector<16xf32> to vector<16x1xf32>
    %50 = vector.broadcast %49 : vector<16x1xf32> to vector<16x16xf32>
    %51 = arith.subf %47, %50 : vector<16x16xf32>
    %52 = math.exp %51 : vector<16x16xf32>
    %cst_20 = arith.constant dense<0.000000e+00> : vector<16xf32>
    %53 = vector.multi_reduction <add>, %52, %cst_20 [1] : vector<16x16xf32> to vector<16xf32>
    %54 = vector.shape_cast %53 : vector<16xf32> to vector<16x1xf32>
    %55 = tpu.reciprocal %54 : vector<16x1xf32> -> vector<16x1xf32>
    %56 = vector.broadcast %55 : vector<16x1xf32> to vector<16x16xf32>
    %57 = arith.mulf %52, %56 : vector<16x16xf32>
    %cst_21 = arith.constant dense<0.000000e+00> : vector<16x8xf32>
    %58 = tpu.matmul %57, %43, %cst_21 {dimension_numbers = #tpu.dot_dimension_numbers<[1], [0], [0], [1], [0, 0, 1, 1], [], []>} : vector<16x16xf32>, vector<16x8xf32>, vector<16x8xf32> -> vector<16x8xf32>
    %59 = vector.extract_strided_slice %19 {offsets = [0, 16], sizes = [16, 8], strides = [1, 1]} : vector<16x32xf32> to vector<16x8xf32>
    %60 = vector.extract_strided_slice %20 {offsets = [0, 16], sizes = [16, 8], strides = [1, 1]} : vector<16x32xf32> to vector<16x8xf32>
    %61 = vector.extract_strided_slice %21 {offsets = [0, 16], sizes = [16, 8], strides = [1, 1]} : vector<16x32xf32> to vector<16x8xf32>
    "tpu.trace_start"() <{level = 10 : i32, message = "qd,kd->qk"}> : () -> ()
    %cst_22 = arith.constant dense<0.000000e+00> : vector<16x16xf32>
    %62 = tpu.matmul %59, %60, %cst_22 {dimension_numbers = #tpu.dot_dimension_numbers<[1], [1], [0], [0], [0, 0, 1, 0], [], []>} : vector<16x8xf32>, vector<16x8xf32>, vector<16x16xf32> -> vector<16x16xf32>
    "tpu.trace_stop"() : () -> ()
    %63 = vector.extract_strided_slice %22 {offsets = [2, 0, 0], sizes = [1, 16, 16], strides = [1, 1, 1]} : vector<4x16x16xf32> to vector<1x16x16xf32>
    %64 = vector.shape_cast %63 : vector<1x16x16xf32> to vector<16x16xf32>
    %65 = arith.addf %62, %64 : vector<16x16xf32>
    %cst_23 = arith.constant dense<0xFF800000> : vector<16xf32>
    %66 = vector.multi_reduction <maximumf>, %65, %cst_23 [1] : vector<16x16xf32> to vector<16xf32>
    %67 = vector.shape_cast %66 : vector<16xf32> to vector<16x1xf32>
    %68 = vector.broadcast %67 : vector<16x1xf32> to vector<16x16xf32>
    %69 = arith.subf %65, %68 : vector<16x16xf32>
    %70 = math.exp %69 : vector<16x16xf32>
    %cst_24 = arith.constant dense<0.000000e+00> : vector<16xf32>
    %71 = vector.multi_reduction <add>, %70, %cst_24 [1] : vector<16x16xf32> to vector<16xf32>
    %72 = vector.shape_cast %71 : vector<16xf32> to vector<16x1xf32>
    %73 = tpu.reciprocal %72 : vector<16x1xf32> -> vector<16x1xf32>
    %74 = vector.broadcast %73 : vector<16x1xf32> to vector<16x16xf32>
    %75 = arith.mulf %70, %74 : vector<16x16xf32>
    %cst_25 = arith.constant dense<0.000000e+00> : vector<16x8xf32>
    %76 = tpu.matmul %75, %61, %cst_25 {dimension_numbers = #tpu.dot_dimension_numbers<[1], [0], [0], [1], [0, 0, 1, 1], [], []>} : vector<16x16xf32>, vector<16x8xf32>, vector<16x8xf32> -> vector<16x8xf32>
    %77 = vector.extract_strided_slice %19 {offsets = [0, 24], sizes = [16, 8], strides = [1, 1]} : vector<16x32xf32> to vector<16x8xf32>
    %78 = vector.extract_strided_slice %20 {offsets = [0, 24], sizes = [16, 8], strides = [1, 1]} : vector<16x32xf32> to vector<16x8xf32>
    %79 = vector.extract_strided_slice %21 {offsets = [0, 24], sizes = [16, 8], strides = [1, 1]} : vector<16x32xf32> to vector<16x8xf32>
    "tpu.trace_start"() <{level = 10 : i32, message = "qd,kd->qk"}> : () -> ()
    %cst_26 = arith.constant dense<0.000000e+00> : vector<16x16xf32>
    %80 = tpu.matmul %77, %78, %cst_26 {dimension_numbers = #tpu.dot_dimension_numbers<[1], [1], [0], [0], [0, 0, 1, 0], [], []>} : vector<16x8xf32>, vector<16x8xf32>, vector<16x16xf32> -> vector<16x16xf32>
    "tpu.trace_stop"() : () -> ()
    %81 = vector.extract_strided_slice %22 {offsets = [3, 0, 0], sizes = [1, 16, 16], strides = [1, 1, 1]} : vector<4x16x16xf32> to vector<1x16x16xf32>
    %82 = vector.shape_cast %81 : vector<1x16x16xf32> to vector<16x16xf32>
    %83 = arith.addf %80, %82 : vector<16x16xf32>
    %cst_27 = arith.constant dense<0xFF800000> : vector<16xf32>
    %84 = vector.multi_reduction <maximumf>, %83, %cst_27 [1] : vector<16x16xf32> to vector<16xf32>
    %85 = vector.shape_cast %84 : vector<16xf32> to vector<16x1xf32>
    %86 = vector.broadcast %85 : vector<16x1xf32> to vector<16x16xf32>
    %87 = arith.subf %83, %86 : vector<16x16xf32>
    %88 = math.exp %87 : vector<16x16xf32>
    %cst_28 = arith.constant dense<0.000000e+00> : vector<16xf32>
    %89 = vector.multi_reduction <add>, %88, %cst_28 [1] : vector<16x16xf32> to vector<16xf32>
    %90 = vector.shape_cast %89 : vector<16xf32> to vector<16x1xf32>
    %91 = tpu.reciprocal %90 : vector<16x1xf32> -> vector<16x1xf32>
    %92 = vector.broadcast %91 : vector<16x1xf32> to vector<16x16xf32>
    %93 = arith.mulf %88, %92 : vector<16x16xf32>
    %cst_29 = arith.constant dense<0.000000e+00> : vector<16x8xf32>
    %94 = tpu.matmul %93, %79, %cst_29 {dimension_numbers = #tpu.dot_dimension_numbers<[1], [0], [0], [1], [0, 0, 1, 1], [], []>} : vector<16x16xf32>, vector<16x8xf32>, vector<16x8xf32> -> vector<16x8xf32>
    %95 = tpu.concatenate %40, %58, %76, %94 in 1 : vector<16x8xf32>, vector<16x8xf32>, vector<16x8xf32>, vector<16x8xf32> -> vector<16x32xf32>
    %96 = vector.extract_strided_slice %3 {offsets = [0, 0], sizes = [32, 32], strides = [1, 1]} : vector<96x32xf32> to vector<32x32xf32>
    %cst_30 = arith.constant dense<0.000000e+00> : vector<16x32xf32>
    %97 = tpu.matmul %95, %96, %cst_30 {dimension_numbers = #tpu.dot_dimension_numbers<[1], [0], [0], [1], [0, 0, 1, 1], [], []>} : vector<16x32xf32>, vector<32x32xf32>, vector<16x32xf32> -> vector<16x32xf32>
    %98 = arith.addf %1, %97 : vector<16x32xf32>
    %cst_31 = arith.constant 0.952380955 : f32
    %99 = vector.broadcast %cst_31 : f32 to vector<16x32xf32>
    %100 = arith.mulf %98, %99 : vector<16x32xf32>
    %101 = arith.mulf %100, %100 : vector<16x32xf32>
    %cst_32 = arith.constant dense<0.000000e+00> : vector<16xf32>
    %102 = vector.multi_reduction <add>, %101, %cst_32 [1] : vector<16x32xf32> to vector<16xf32>
    %103 = vector.shape_cast %102 : vector<16xf32> to vector<16x1xf32>
    %cst_33 = arith.constant 3.200000e+01 : f32
    %104 = vector.broadcast %cst_33 : f32 to vector<16x1xf32>
    %105 = arith.divf %103, %104 : vector<16x1xf32>
    %cst_34 = arith.constant 9.99999997E-7 : f32
    %106 = vector.broadcast %cst_34 : f32 to vector<16x1xf32>
    %107 = arith.addf %105, %106 : vector<16x1xf32>
    %108 = math.rsqrt %107 : vector<16x1xf32>
    %109 = vector.broadcast %108 : vector<16x1xf32> to vector<16x32xf32>
    %110 = arith.mulf %100, %109 : vector<16x32xf32>
    %111 = vector.extract_strided_slice %2 {offsets = [1, 0], sizes = [1, 32], strides = [1, 1]} : vector<2x32xf32> to vector<1x32xf32>
    %112 = vector.broadcast %111 : vector<1x32xf32> to vector<16x32xf32>
    %113 = arith.mulf %110, %112 : vector<16x32xf32>
    %c0_35 = arith.constant 0 : index
    %c0_36 = arith.constant 0 : index
    %114 = vector.load %arg5[%c0_35, %c0_36] : memref<32x128xf32, #tpu.memory_space<vmem>>, vector<32x128xf32>
    %cst_37 = arith.constant dense<0.000000e+00> : vector<16x128xf32>
    %115 = tpu.matmul %113, %114, %cst_37 {dimension_numbers = #tpu.dot_dimension_numbers<[1], [0], [0], [1], [0, 0, 1, 1], [], []>} : vector<16x32xf32>, vector<32x128xf32>, vector<16x128xf32> -> vector<16x128xf32>
    %116 = vector.extract_strided_slice %115 {offsets = [0, 0], sizes = [16, 64], strides = [1, 1]} : vector<16x128xf32> to vector<16x64xf32>
    %cst_38 = arith.constant 5.000000e-01 : f32
    %117 = vector.broadcast %cst_38 : f32 to vector<16x64xf32>
    %118 = arith.mulf %117, %116 : vector<16x64xf32>
    %cst_39 = arith.constant 0.707106769 : f32
    %119 = vector.broadcast %cst_39 : f32 to vector<16x64xf32>
    %120 = arith.mulf %116, %119 : vector<16x64xf32>
    %cst_40 = arith.constant 0.000000e+00 : f32
    %121 = vector.broadcast %cst_40 : f32 to vector<16x64xf32>
    %122 = arith.cmpf oge, %120, %121 : vector<16x64xf32>
    %cst_41 = arith.constant 1.000000e+00 : f32
    %cst_42 = arith.constant -1.000000e+00 : f32
    %123 = vector.broadcast %cst_41 : f32 to vector<16x64xf32>
    %124 = vector.broadcast %cst_42 : f32 to vector<16x64xf32>
    %125 = arith.select %122, %123, %124 : vector<16x64xi1>, vector<16x64xf32>
    %126 = math.absf %120 : vector<16x64xf32>
    %cst_43 = arith.constant 0.327591091 : f32
    %127 = vector.broadcast %cst_43 : f32 to vector<16x64xf32>
    %128 = arith.mulf %127, %126 : vector<16x64xf32>
    %cst_44 = arith.constant 1.000000e+00 : f32
    %129 = vector.broadcast %cst_44 : f32 to vector<16x64xf32>
    %130 = arith.addf %129, %128 : vector<16x64xf32>
    %cst_45 = arith.constant 1.000000e+00 : f32
    %131 = vector.broadcast %cst_45 : f32 to vector<16x64xf32>
    %132 = arith.divf %131, %130 : vector<16x64xf32>
    %cst_46 = arith.constant 1.06140542 : f32
    %133 = vector.broadcast %cst_46 : f32 to vector<16x64xf32>
    %134 = arith.mulf %133, %132 : vector<16x64xf32>
    %cst_47 = arith.constant -1.45315206 : f32
    %135 = vector.broadcast %cst_47 : f32 to vector<16x64xf32>
    %136 = arith.addf %134, %135 : vector<16x64xf32>
    %137 = arith.mulf %136, %132 : vector<16x64xf32>
    %cst_48 = arith.constant 1.42141378 : f32
    %138 = vector.broadcast %cst_48 : f32 to vector<16x64xf32>
    %139 = arith.addf %137, %138 : vector<16x64xf32>
    %140 = arith.mulf %139, %132 : vector<16x64xf32>
    %cst_49 = arith.constant -0.284496725 : f32
    %141 = vector.broadcast %cst_49 : f32 to vector<16x64xf32>
    %142 = arith.addf %140, %141 : vector<16x64xf32>
    %143 = arith.mulf %142, %132 : vector<16x64xf32>
    %cst_50 = arith.constant 0.254829586 : f32
    %144 = vector.broadcast %cst_50 : f32 to vector<16x64xf32>
    %145 = arith.addf %143, %144 : vector<16x64xf32>
    %146 = arith.mulf %145, %132 : vector<16x64xf32>
    %cst_51 = arith.constant 0.000000e+00 : f32
    %147 = vector.broadcast %cst_51 : f32 to vector<16x64xf32>
    %148 = arith.subf %147, %126 : vector<16x64xf32>
    %149 = arith.mulf %148, %126 : vector<16x64xf32>
    %150 = math.exp %149 : vector<16x64xf32>
    %151 = arith.mulf %146, %150 : vector<16x64xf32>
    %cst_52 = arith.constant 1.000000e+00 : f32
    %152 = vector.broadcast %cst_52 : f32 to vector<16x64xf32>
    %153 = arith.subf %152, %151 : vector<16x64xf32>
    %154 = arith.mulf %125, %153 : vector<16x64xf32>
    %cst_53 = arith.constant 1.000000e+00 : f32
    %155 = vector.broadcast %cst_53 : f32 to vector<16x64xf32>
    %156 = arith.addf %155, %154 : vector<16x64xf32>
    %157 = arith.mulf %118, %156 : vector<16x64xf32>
    %158 = vector.extract_strided_slice %115 {offsets = [0, 64], sizes = [16, 64], strides = [1, 1]} : vector<16x128xf32> to vector<16x64xf32>
    %159 = arith.mulf %157, %158 : vector<16x64xf32>
    %160 = vector.extract_strided_slice %3 {offsets = [32, 0], sizes = [64, 32], strides = [1, 1]} : vector<96x32xf32> to vector<64x32xf32>
    %cst_54 = arith.constant dense<0.000000e+00> : vector<16x32xf32>
    %161 = tpu.matmul %159, %160, %cst_54 {dimension_numbers = #tpu.dot_dimension_numbers<[1], [0], [0], [1], [0, 0, 1, 1], [], []>} : vector<16x64xf32>, vector<64x32xf32>, vector<16x32xf32> -> vector<16x32xf32>
    %162 = arith.addf %100, %161 : vector<16x32xf32>
    %cst_55 = arith.constant 0.952380955 : f32
    %163 = vector.broadcast %cst_55 : f32 to vector<16x32xf32>
    %164 = arith.mulf %162, %163 : vector<16x32xf32>
    %165 = vector.shape_cast %164 : vector<16x32xf32> to vector<2x8x32xf32>
    %c0_56 = arith.constant 0 : index
    %c0_57 = arith.constant 0 : index
    %c0_58 = arith.constant 0 : index
    %166 = vector.load %arg7[%c0_56, %c0_57, %c0_58] : memref<2x8x32xf32, #tpu.memory_space<vmem>>, vector<2x8x32xf32>
    tpu.vector_store %arg7[%c0_56, %c0_57, %c0_58], %165 {strides = array<i32>} : memref<2x8x32xf32, #tpu.memory_space<vmem>>, vector<2x8x32xf32>,
    return
  }
  func.func @transform_0(%arg0: i32) -> (i32, i32, i32) {
    %c0_i32 = arith.constant 0 : i32
    %c0_i32_0 = arith.constant 0 : i32
    %c0_i32_1 = arith.constant 0 : i32
    %c0_i32_2 = arith.constant 0 : i32
    return %c0_i32, %c0_i32_0, %c0_i32_1 : i32, i32, i32
  }
  func.func @transform_1(%arg0: i32) -> (i32, i32, i32) {
    %c0_i32 = arith.constant 0 : i32
    %c0_i32_0 = arith.constant 0 : i32
    %c0_i32_1 = arith.constant 0 : i32
    %c0_i32_2 = arith.constant 0 : i32
    return %c0_i32, %c0_i32_0, %c0_i32_1 : i32, i32, i32
  }
  func.func @transform_2(%arg0: i32) -> (i32, i32) {
    %c0_i32 = arith.constant 0 : i32
    %c0_i32_0 = arith.constant 0 : i32
    %c0_i32_1 = arith.constant 0 : i32
    return %c0_i32, %c0_i32_0 : i32, i32
  }
  func.func @transform_3(%arg0: i32) -> (i32, i32) {
    %c0_i32 = arith.constant 0 : i32
    %c0_i32_0 = arith.constant 0 : i32
    %c0_i32_1 = arith.constant 0 : i32
    return %c0_i32, %c0_i32_0 : i32, i32
  }
  func.func @transform_4(%arg0: i32) -> (i32, i32) {
    %c0_i32 = arith.constant 0 : i32
    %c0_i32_0 = arith.constant 0 : i32
    %c0_i32_1 = arith.constant 0 : i32
    return %c0_i32, %c0_i32_0 : i32, i32
  }
  func.func @transform_5(%arg0: i32) -> (i32, i32) {
    %c0_i32 = arith.constant 0 : i32
    %c0_i32_0 = arith.constant 0 : i32
    %c0_i32_1 = arith.constant 0 : i32
    return %c0_i32, %c0_i32_0 : i32, i32
  }
  func.func @transform_6(%arg0: i32) -> (i32, i32, i32) {
    %c0_i32 = arith.constant 0 : i32
    %c0_i32_0 = arith.constant 0 : i32
    %c0_i32_1 = arith.constant 0 : i32
    %c0_i32_2 = arith.constant 0 : i32
    return %c0_i32, %c0_i32_0, %c0_i32_1 : i32, i32, i32
  }
}

</mosaic_0001>

<llo_original>
// kernel: _fused_block_call.1
$region0: #{_fused_block_call.1}
  #allocation0 [shape = 'u32[]', space=smem, size = 0x4, offset = 0x4, fixed_abs, tag = 'smem constant byte address 0x4 - core index']
  #allocation1 [shape = 'u32[144,128]{1,0:T(1,128)}', space=vmem, size = 0x12000, scoped, tag = 'internal scratch']
  %s0 = inlined_call_operand.hbm [shape: f32[2,8,32], index: 0, kind: input, shape index: {}, may-alias: {0,6}]
  %s1 = inlined_call_operand.vmem [shape: f32[4,16,16], index: 1, kind: input, shape index: {}]
  %s2 = inlined_call_operand.vmem [shape: f32[2,32], index: 2, kind: input, shape index: {}]
  %s3 = inlined_call_operand.vmem [shape: f32[32,96], index: 3, kind: input, shape index: {}]
  %s4 = inlined_call_operand.vmem [shape: f32[32,128], index: 4, kind: input, shape index: {}]
  %s5 = inlined_call_operand.vmem [shape: f32[96,32], index: 5, kind: input, shape index: {}]
  %s6 = inlined_call_operand.hbm [shape: f32[2,8,32], index: 6, kind: output, shape index: {}, may-alias: {0,6}]
  %s7 = sld [smem:[#allocation0]]
  $region38: #{_fused_block_call.1} parent=0
    _
  %s9 = ssub.s32 1, %s7
  %s10 = scalar_select 0, %s9, %s7
  $region1: #{_fused_block_call.1} parent=0
    #allocation2 [shape = 'u8[8192]{0}', space=vmem, size = 0x2000, scoped, tag = 'input window, operand 0, single buffered']
    #allocation3 [shape = 's32[1]{0}', space=sflag, size = 0x4, scoped, tag = 'scoped memory for _fused_block_call.1']
    #allocation4 [shape = 's32[1]{0}', space=sflag, size = 0x4, scoped, tag = 'scoped memory for _fused_block_call.1']
    #allocation5 [shape = 'u8[8192]{0}', space=vmem, size = 0x2000, scoped, tag = 'output window, operand 0, single buffered']
    %11 = vsyncpa [#allocation3], 0
    %12 = vsyncpa [#allocation4], 0
    // Predicated region
    $region2: #{_fused_block_call.1} parent=1 // pred_check
      _
    $region3: #{_fused_block_call.1} parent=1 // pred_check_branch
      %14 = sbr.rel (0) target = $region5
    $region4: #{_fused_block_call.1} parent=1 // pred_region
      %s16 = ssub.s32 256, 256
      %17 = vsyncadd [#allocation3], %s16
      %s18 = sshll.u32 [#allocation2], 4
      %s19 = int_to_ptr.vmem [resolvable:$true] %s18
      %24 = dma.hbm_to_vmem [thread:$0]  %s0, 256, %s19, [#allocation3], 128, 128, 8
    $region5: #{_fused_block_call.1} parent=1 // pred_fallthru
      _
    // Predicated region
    $region6: #{_fused_block_call.1} parent=1 // pred_check
      _
    $region7: #{_fused_block_call.1} parent=1 // pred_check_branch
      %26 = sbr.rel (0) target = $region9
    $region8: #{_fused_block_call.1} parent=1 // pred_region
      _
    $region9: #{_fused_block_call.1} parent=1 // pred_fallthru
      _
    // Predicated region
    $region10: #{_fused_block_call.1} parent=1 // pred_check
      _
    $region11: #{_fused_block_call.1} parent=1 // pred_check_branch
      %28 = sbr.rel (0) target = $region13
    $region12: #{_fused_block_call.1} parent=1 // pred_region
      _
    $region13: #{_fused_block_call.1} parent=1 // pred_fallthru
      _
    // Predicated region
    $region14: #{_fused_block_call.1} parent=1 // pred_check
      _
    $region15: #{_fused_block_call.1} parent=1 // pred_check_branch
      %30 = sbr.rel (0) target = $region17
    $region16: #{_fused_block_call.1} parent=1 // pred_region
      _
    $region17: #{_fused_block_call.1} parent=1 // pred_fallthru
      _
    // Predicated region
    $region18: #{_fused_block_call.1} parent=1 // pred_check
      _
    $region19: #{_fused_block_call.1} parent=1 // pred_check_branch
      %32 = sbr.rel (0) target = $region21
    $region20: #{_fused_block_call.1} parent=1 // pred_region
      _
    $region21: #{_fused_block_call.1} parent=1 // pred_fallthru
      _
    // Predicated region
    $region22: #{_fused_block_call.1} parent=1 // pred_check
      _
    $region23: #{_fused_block_call.1} parent=1 // pred_check_branch
      %34 = sbr.rel (0) target = $region25
    $region24: #{_fused_block_call.1} parent=1 // pred_region
      _
    $region25: #{_fused_block_call.1} parent=1 // pred_fallthru
      _
    // Predicated region
    $region26: #{_fused_block_call.1} parent=1 // pred_check
      _
    $region27: #{_fused_block_call.1} parent=1 // pred_check_branch
      %36 = sbr.rel (0) target = $region29
    $region28: #{_fused_block_call.1} parent=1 // pred_region
      %37 = dma.done [#allocation3], 256
    $region29: #{_fused_block_call.1} parent=1 // pred_fallthru
      _
    %v38 = vld [vmem:[#allocation2] sm:$0xff]
    %v39 = vld [vmem:[#allocation2 + $0x8] sm:$0xff]
    %v40 = vld [vmem:[%s2] sm:$0x3]
    %v41 = vld [vmem:[%s5] sm:$0xff]
    %v42 = vld [vmem:[%s5 + $0x8] sm:$0xff]
    %v43 = vld [vmem:[%s5 + $0x10] sm:$0xff]
    %v44 = vld [vmem:[%s5 + $0x18] sm:$0xff]
    %v45 = vld [vmem:[%s5 + $0x20] sm:$0xff]
    %v46 = vld [vmem:[%s5 + $0x28] sm:$0xff]
    %v47 = vld [vmem:[%s5 + $0x30] sm:$0xff]
    %v48 = vld [vmem:[%s5 + $0x38] sm:$0xff]
    %v49 = vld [vmem:[%s5 + $0x40] sm:$0xff]
    %v50 = vld [vmem:[%s5 + $0x48] sm:$0xff]
    %v51 = vld [vmem:[%s5 + $0x50] sm:$0xff]
    %v52 = vld [vmem:[%s5 + $0x58] sm:$0xff]
    %v53 = vmul.f32 %v38, %v38
    %v54 = vmul.f32 %v39, %v39
    %vm55 = vcmask 261120
    %v56 = vsel %vm55, %v53, 0.0
    %57 = vadd.xlane.f32.xlu0 %v56
    %v58 = vpop.xlane.xlu0 %57
    %v59 = vsel %vm55, %v54, 0.0
    %60 = vadd.xlane.f32.xlu0 %v59
    %v61 = vpop.xlane.xlu0 %60
    %v62 = vrcp.pop 32.0
    %v63 = vmul.f32 %v58, %v62
    %v64 = vmul.f32 %v61, %v62
    %v65 = vadd.f32 %v63, 1e-06
    %v66 = vadd.f32 %v64, 1e-06
    %v67 = vrsqrt.pop %v65
    %v68 = vrsqrt.pop %v66
    %v69 = vmul.f32 %v38, %v67
    %v70 = vmul.f32 %v39, %v68
    %v71 = vlaneseq
    %v72 = vshrl.u32 %v71, 7
    %v73 = vsub.s32 0, %v72
    %v74 = vrot.slane %v40, %v73
    %v75 = vmul.f32 %v69, %v74
    %v76 = vmul.f32 %v70, %v74
    %v77 = vld [vmem:[%s3] sm:$0xff]
    %v78 = vld [vmem:[%s3 + $0x8] sm:$0xff]
    %v79 = vld [vmem:[%s3 + $0x10] sm:$0xff]
    %v80 = vld [vmem:[%s3 + $0x18] sm:$0xff]
    %v82 = vsel %vm55, %v75, 0
    %v85 = vsel %vm55, %v76, 0
    %87 = vmatprep.subr.mxu0 0.0
    %88 = vmatpush1.msra.mxu0 %v77
    %89 = vmatprep.subr.mxu0 0.0
    %90 = vmatpush1.msra.mxu0 %v78
    %91 = vmatprep.subr.mxu0 0.0
    %92 = vmatpush1.msra.mxu0 %v79
    %93 = vmatprep.subr.mxu0 0.0
    %94 = vmatpush1.msra.mxu0 %v80
    %95 = vmatprep.subr.mxu0 0.0
    %96 = vmatpush1.msra.mxu0 0.0
    %97 = vmatprep.subr.mxu0 0.0
    %98 = vmatpush1.msra.mxu0 0.0
    %99 = vmatprep.subr.mxu0 0.0
    %100 = vmatpush1.msra.mxu0 0.0
    %101 = vmatprep.subr.mxu0 0.0
    %102 = vmatpush1.msra.mxu0 0.0
    %103 = vmatprep.subr.mxu0 0.0
    %104 = vmatpush1.msra.mxu0 0.0
    %105 = vmatprep.subr.mxu0 0.0
    %106 = vmatpush1.msra.mxu0 0.0
    %107 = vmatprep.subr.mxu0 0.0
    %108 = vmatpush1.msra.mxu0 0.0
    %109 = vmatprep.subr.mxu0 0.0
    %110 = vmatpush1.msra.mxu0 0.0
    %111 = vmatprep.subr.mxu0 0.0
    %112 = vmatpush1.msra.mxu0 0.0
    %113 = vmatprep.subr.mxu0 0.0
    %114 = vmatpush1.msra.mxu0 0.0
    %115 = vmatprep.subr.mxu0 0.0
    %116 = vmatpush1.msra.mxu0 0.0
    %117 = vmatprep.subr.mxu0 0.0
    %118 = vmatpush1.msra.mxu0 0.0
    %119 = vmatprep.subr.mxu0 0.0
    %120 = vmatpush1.msra.mxu0 0.0
    %121 = vmatprep.subr.mxu0 0.0
    %122 = vmatpush1.msra.mxu0 0.0
    %123 = vmatprep.subr.mxu0 0.0
    %124 = vmatpush1.msra.mxu0 0.0
    %125 = vmatprep.subr.mxu0 0.0
    %126 = vmatpush1.msra.mxu0 0.0
    %127 = vmatprep.subr.mxu0 0.0
    %128 = vmatpush1.msra.mxu0 0.0
    %129 = vmatprep.subr.mxu0 0.0
    %130 = vmatpush1.msra.mxu0 0.0
    %131 = vmatprep.subr.mxu0 0.0
    %132 = vmatpush1.msra.mxu0 0.0
    %133 = vmatprep.subr.mxu0 0.0
    %134 = vmatpush1.msra.mxu0 0.0
    %135 = vmatprep.subr.mxu0 0.0
    %136 = vmatpush1.msra.mxu0 0.0
    %137 = vmatprep.subr.mxu0 0.0
    %138 = vmatpush1.msra.mxu0 0.0
    %139 = vmatprep.subr.mxu0 0.0
    %140 = vmatpush1.msra.mxu0 0.0
    %141 = vmatprep.subr.mxu0 0.0
    %142 = vmatpush1.msra.mxu0 0.0
    %143 = vmatprep.subr.mxu0 0.0
    %144 = vmatpush1.msra.mxu0 0.0
    %145 = vmatprep.subr.mxu0 0.0
    %146 = vmatpush1.msra.mxu0 0.0
    %147 = vmatprep.subr.mxu0 0.0
    %148 = vmatpush1.msra.mxu0 0.0
    %149 = vmatprep.subr.mxu0 0.0
    %150 = vmatpush1.msra.mxu0 0.0
    %151 = vmatprep.mubr.f32.mxu0 0.0
    %152 = vmatmul.mubr.f32.gmra.mrb[0].mxu0 %v82
    %v153 = vpop.f32.mrb[0].mxu0
    %v154 = vadd.f32 0.0, %v153
    %v155 = vpop.f32.mrb[0].mxu0
    %156 = vmatprep.mubr.f32.mxu0 0.0
    %157 = vmatmul.mubr.f32.gmra.mrb[0].mxu0 %v85
    %v158 = vpop.f32.mrb[0].mxu0
    %v159 = vadd.f32 0.0, %v158
    %v160 = vpop.f32.mrb[0].mxu0
    %161 = vdwg.mxu0
    %v162 = vld [vmem:[%s1] sm:$0xff]
    %v163 = vld [vmem:[%s1 + $0x8] sm:$0xff]
    %v164 = vld [vmem:[%s1 + $0x10] sm:$0xff]
    %v165 = vld [vmem:[%s1 + $0x18] sm:$0xff]
    %v166 = vld [vmem:[%s1 + $0x20] sm:$0xff]
    %v167 = vld [vmem:[%s1 + $0x28] sm:$0xff]
    %v168 = vld [vmem:[%s1 + $0x30] sm:$0xff]
    %v169 = vld [vmem:[%s1 + $0x38] sm:$0xff]
    %172 = vrot.lane.b32.xlu0 %v154, 96
    %v173 = vpop.permute.xlu0 %172
    %174 = vrot.lane.b32.xlu0 %v159, 96
    %v175 = vpop.permute.xlu0 %174
    %vm176 = vcmask 64512
    %v177 = vsel %vm176, %v154, 0
    %v179 = vsel %vm176, %v159, 0
    %v181 = vsel %vm176, %v173, 0
    %v183 = vsel %vm176, %v175, 0
    %185 = vmatprep.subr.mxu0 0.0
    %186 = vmatpush1.xpose.msra.mxu0 %v181
    %187 = vmatprep.subr.mxu0 0.0
    %188 = vmatpush1.xpose.msra.mxu0 %v183
    %189 = vmatprep.subr.mxu0 0.0
    %190 = vmatpush1.xpose.msra.mxu0 0.0
    %191 = vmatprep.subr.mxu0 0.0
    %192 = vmatpush1.xpose.msra.mxu0 0.0
    %193 = vmatprep.subr.mxu0 0.0
    %194 = vmatpush1.xpose.msra.mxu0 0.0
    %195 = vmatprep.subr.mxu0 0.0
    %196 = vmatpush1.xpose.msra.mxu0 0.0
    %197 = vmatprep.subr.mxu0 0.0
    %198 = vmatpush1.xpose.msra.mxu0 0.0
    %199 = vmatprep.subr.mxu0 0.0
    %200 = vmatpush1.xpose.msra.mxu0 0.0
    %201 = vmatprep.subr.mxu0 0.0
    %202 = vmatpush1.xpose.msra.mxu0 0.0
    %203 = vmatprep.subr.mxu0 0.0
    %204 = vmatpush1.xpose.msra.mxu0 0.0
    %205 = vmatprep.subr.mxu0 0.0
    %206 = vmatpush1.xpose.msra.mxu0 0.0
    %207 = vmatprep.subr.mxu0 0.0
    %208 = vmatpush1.xpose.msra.mxu0 0.0
    %209 = vmatprep.subr.mxu0 0.0
    %210 = vmatpush1.xpose.msra.mxu0 0.0
    %211 = vmatprep.subr.mxu0 0.0
    %212 = vmatpush1.xpose.msra.mxu0 0.0
    %213 = vmatprep.subr.mxu0 0.0
    %214 = vmatpush1.xpose.msra.mxu0 0.0
    %215 = vmatprep.subr.mxu0 0.0
    %216 = vmatpush1.xpose.msra.mxu0 0.0
    %217 = vmatprep.subr.mxu0 0.0
    %218 = vmatpush1.xpose.msra.mxu0 0.0
    %219 = vmatprep.subr.mxu0 0.0
    %220 = vmatpush1.xpose.msra.mxu0 0.0
    %221 = vmatprep.subr.mxu0 0.0
    %222 = vmatpush1.xpose.msra.mxu0 0.0
    %223 = vmatprep.subr.mxu0 0.0
    %224 = vmatpush1.xpose.msra.mxu0 0.0
    %225 = vmatprep.subr.mxu0 0.0
    %226 = vmatpush1.xpose.msra.mxu0 0.0
    %227 = vmatprep.subr.mxu0 0.0
    %228 = vmatpush1.xpose.msra.mxu0 0.0
    %229 = vmatprep.subr.mxu0 0.0
    %230 = vmatpush1.xpose.msra.mxu0 0.0
    %231 = vmatprep.subr.mxu0 0.0
    %232 = vmatpush1.xpose.msra.mxu0 0.0
    %233 = vmatprep.subr.mxu0 0.0
    %234 = vmatpush1.xpose.msra.mxu0 0.0
    %235 = vmatprep.subr.mxu0 0.0
    %236 = vmatpush1.xpose.msra.mxu0 0.0
    %237 = vmatprep.subr.mxu0 0.0
    %238 = vmatpush1.xpose.msra.mxu0 0.0
    %239 = vmatprep.subr.mxu0 0.0
    %240 = vmatpush1.xpose.msra.mxu0 0.0
    %241 = vmatprep.subr.mxu0 0.0
    %242 = vmatpush1.xpose.msra.mxu0 0.0
    %243 = vmatprep.subr.mxu0 0.0
    %244 = vmatpush1.xpose.msra.mxu0 0.0
    %245 = vmatprep.subr.mxu0 0.0
    %246 = vmatpush1.xpose.msra.mxu0 0.0
    %247 = vmatprep.subr.mxu0 0.0
    %248 = vmatpush1.xpose.msra.mxu0 0.0
    %249 = vmatprep.mubr.f32.mxu0 0.0
    %250 = vmatmul.mubr.f32.gmra.mrb[0].mxu0 %v177
    %v251 = vpop.f32.mrb[0].mxu0
    %v252 = vadd.f32 %v162, %v251
    %v253 = vpop.f32.mrb[0].mxu0
    %254 = vmatprep.mubr.f32.mxu0 0.0
    %255 = vmatmul.mubr.f32.gmra.mrb[0].mxu0 %v179
    %v256 = vpop.f32.mrb[0].mxu0
    %v257 = vadd.f32 %v163, %v256
    %v258 = vpop.f32.mrb[0].mxu0
    %259 = vdwg.mxu0
    %vm260 = vcmask 130048
    %v261 = vsel %vm260, %v252, -inf
    %262 = vmax.xlane.f32.xlu0 %v261
    %v263 = vpop.xlane.xlu0 %262
    %v264 = vsel %vm260, %v257, -inf
    %265 = vmax.xlane.f32.xlu0 %v264
    %v266 = vpop.xlane.xlu0 %265
    %v267 = vsub.f32 %v252, %v263
    %v268 = vsub.f32 %v257, %v266
    %v269 = vmul.f32 %v267, 1.442695
    %v270 = vpow.pop %v269
    %v271 = vmul.f32 %v268, 1.442695
    %v272 = vpow.pop %v271
    %v273 = vsel %vm260, %v270, 0.0
    %274 = vadd.xlane.f32.xlu0 %v273
    %v275 = vpop.xlane.xlu0 %274
    %v276 = vsel %vm260, %v272, 0.0
    %277 = vadd.xlane.f32.xlu0 %v276
    %v278 = vpop.xlane.xlu0 %277
    %v279 = vrcp.pop %v275
    %v280 = vrcp.pop %v278
    %v281 = vmul.f32 %v270, %v279
    %v282 = vmul.f32 %v272, %v280
    %283 = vrot.lane.b32.xlu0 %v154, 64
    %v284 = vpop.permute.xlu0 %283
    %285 = vrot.lane.b32.xlu0 %v159, 64
    %v286 = vpop.permute.xlu0 %285
    %v290 = vsel %vm260, %v281, 0
    %v293 = vsel %vm260, %v282, 0
    %295 = vmatprep.subr.mxu0 0.0
    %296 = vmatpush1.msra.mxu0 %v284
    %297 = vmatprep.subr.mxu0 0.0
    %298 = vmatpush1.msra.mxu0 %v286
    %299 = vmatprep.subr.mxu0 0.0
    %300 = vmatpush1.msra.mxu0 0.0
    %301 = vmatprep.subr.mxu0 0.0
    %302 = vmatpush1.msra.mxu0 0.0
    %303 = vmatprep.subr.mxu0 0.0
    %304 = vmatpush1.msra.mxu0 0.0
    %305 = vmatprep.subr.mxu0 0.0
    %306 = vmatpush1.msra.mxu0 0.0
    %307 = vmatprep.subr.mxu0 0.0
    %308 = vmatpush1.msra.mxu0 0.0
    %309 = vmatprep.subr.mxu0 0.0
    %310 = vmatpush1.msra.mxu0 0.0
    %311 = vmatprep.subr.mxu0 0.0
    %312 = vmatpush1.msra.mxu0 0.0
    %313 = vmatprep.subr.mxu0 0.0
    %314 = vmatpush1.msra.mxu0 0.0
    %315 = vmatprep.subr.mxu0 0.0
    %316 = vmatpush1.msra.mxu0 0.0
    %317 = vmatprep.subr.mxu0 0.0
    %318 = vmatpush1.msra.mxu0 0.0
    %319 = vmatprep.subr.mxu0 0.0
    %320 = vmatpush1.msra.mxu0 0.0
    %321 = vmatprep.subr.mxu0 0.0
    %322 = vmatpush1.msra.mxu0 0.0
    %323 = vmatprep.subr.mxu0 0.0
    %324 = vmatpush1.msra.mxu0 0.0
    %325 = vmatprep.subr.mxu0 0.0
    %326 = vmatpush1.msra.mxu0 0.0
    %327 = vmatprep.subr.mxu0 0.0
    %328 = vmatpush1.msra.mxu0 0.0
    %329 = vmatprep.subr.mxu0 0.0
    %330 = vmatpush1.msra.mxu0 0.0
    %331 = vmatprep.subr.mxu0 0.0
    %332 = vmatpush1.msra.mxu0 0.0
    %333 = vmatprep.subr.mxu0 0.0
    %334 = vmatpush1.msra.mxu0 0.0
    %335 = vmatprep.subr.mxu0 0.0
    %336 = vmatpush1.msra.mxu0 0.0
    %337 = vmatprep.subr.mxu0 0.0
    %338 = vmatpush1.msra.mxu0 0.0
    %339 = vmatprep.subr.mxu0 0.0
    %340 = vmatpush1.msra.mxu0 0.0
    %341 = vmatprep.subr.mxu0 0.0
    %342 = vmatpush1.msra.mxu0 0.0
    %343 = vmatprep.subr.mxu0 0.0
    %344 = vmatpush1.msra.mxu0 0.0
    %345 = vmatprep.subr.mxu0 0.0
    %346 = vmatpush1.msra.mxu0 0.0
    %347 = vmatprep.subr.mxu0 0.0
    %348 = vmatpush1.msra.mxu0 0.0
    %349 = vmatprep.subr.mxu0 0.0
    %350 = vmatpush1.msra.mxu0 0.0
    %351 = vmatprep.subr.mxu0 0.0
    %352 = vmatpush1.msra.mxu0 0.0
    %353 = vmatprep.subr.mxu0 0.0
    %354 = vmatpush1.msra.mxu0 0.0
    %355 = vmatprep.subr.mxu0 0.0
    %356 = vmatpush1.msra.mxu0 0.0
    %357 = vmatprep.subr.mxu0 0.0
    %358 = vmatpush1.msra.mxu0 0.0
    %359 = vmatprep.mubr.f32.mxu0 0.0
    %360 = vmatmul.mubr.f32.gmra.mrb[0].mxu0 %v290
    %v361 = vpop.f32.mrb[0].mxu0
    %v362 = vadd.f32 0.0, %v361
    %v363 = vpop.f32.mrb[0].mxu0
    %364 = vmatprep.mubr.f32.mxu0 0.0
    %365 = vmatmul.mubr.f32.gmra.mrb[0].mxu0 %v293
    %v366 = vpop.f32.mrb[0].mxu0
    %v367 = vadd.f32 0.0, %v366
    %v368 = vpop.f32.mrb[0].mxu0
    %369 = vdwg.mxu0
    %370 = vrot.lane.b32.xlu0 %v154, 120
    %v371 = vpop.permute.xlu0 %370
    %372 = vrot.lane.b32.xlu0 %v159, 120
    %v373 = vpop.permute.xlu0 %372
    %374 = vrot.lane.b32.xlu0 %v154, 88
    %v375 = vpop.permute.xlu0 %374
    %376 = vrot.lane.b32.xlu0 %v159, 88
    %v377 = vpop.permute.xlu0 %376
    %v378 = vsel %vm176, %v371, 0
    %v380 = vsel %vm176, %v373, 0
    %v382 = vsel %vm176, %v375, 0
    %v384 = vsel %vm176, %v377, 0
    %386 = vmatprep.subr.mxu0 0.0
    %387 = vmatpush1.xpose.msra.mxu0 %v382
    %388 = vmatprep.subr.mxu0 0.0
    %389 = vmatpush1.xpose.msra.mxu0 %v384
    %390 = vmatprep.subr.mxu0 0.0
    %391 = vmatpush1.xpose.msra.mxu0 0.0
    %392 = vmatprep.subr.mxu0 0.0
    %393 = vmatpush1.xpose.msra.mxu0 0.0
    %394 = vmatprep.subr.mxu0 0.0
    %395 = vmatpush1.xpose.msra.mxu0 0.0
    %396 = vmatprep.subr.mxu0 0.0
    %397 = vmatpush1.xpose.msra.mxu0 0.0
    %398 = vmatprep.subr.mxu0 0.0
    %399 = vmatpush1.xpose.msra.mxu0 0.0
    %400 = vmatprep.subr.mxu0 0.0
    %401 = vmatpush1.xpose.msra.mxu0 0.0
    %402 = vmatprep.subr.mxu0 0.0
    %403 = vmatpush1.xpose.msra.mxu0 0.0
    %404 = vmatprep.subr.mxu0 0.0
    %405 = vmatpush1.xpose.msra.mxu0 0.0
    %406 = vmatprep.subr.mxu0 0.0
    %407 = vmatpush1.xpose.msra.mxu0 0.0
    %408 = vmatprep.subr.mxu0 0.0
    %409 = vmatpush1.xpose.msra.mxu0 0.0
    %410 = vmatprep.subr.mxu0 0.0
    %411 = vmatpush1.xpose.msra.mxu0 0.0
    %412 = vmatprep.subr.mxu0 0.0
    %413 = vmatpush1.xpose.msra.mxu0 0.0
    %414 = vmatprep.subr.mxu0 0.0
    %415 = vmatpush1.xpose.msra.mxu0 0.0
    %416 = vmatprep.subr.mxu0 0.0
    %417 = vmatpush1.xpose.msra.mxu0 0.0
    %418 = vmatprep.subr.mxu0 0.0
    %419 = vmatpush1.xpose.msra.mxu0 0.0
    %420 = vmatprep.subr.mxu0 0.0
    %421 = vmatpush1.xpose.msra.mxu0 0.0
    %422 = vmatprep.subr.mxu0 0.0
    %423 = vmatpush1.xpose.msra.mxu0 0.0
    %424 = vmatprep.subr.mxu0 0.0
    %425 = vmatpush1.xpose.msra.mxu0 0.0
    %426 = vmatprep.subr.mxu0 0.0
    %427 = vmatpush1.xpose.msra.mxu0 0.0
    %428 = vmatprep.subr.mxu0 0.0
    %429 = vmatpush1.xpose.msra.mxu0 0.0
    %430 = vmatprep.subr.mxu0 0.0
    %431 = vmatpush1.xpose.msra.mxu0 0.0
    %432 = vmatprep.subr.mxu0 0.0
    %433 = vmatpush1.xpose.msra.mxu0 0.0
    %434 = vmatprep.subr.mxu0 0.0
    %435 = vmatpush1.xpose.msra.mxu0 0.0
    %436 = vmatprep.subr.mxu0 0.0
    %437 = vmatpush1.xpose.msra.mxu0 0.0
    %438 = vmatprep.subr.mxu0 0.0
    %439 = vmatpush1.xpose.msra.mxu0 0.0
    %440 = vmatprep.subr.mxu0 0.0
    %441 = vmatpush1.xpose.msra.mxu0 0.0
    %442 = vmatprep.subr.mxu0 0.0
    %443 = vmatpush1.xpose.msra.mxu0 0.0
    %444 = vmatprep.subr.mxu0 0.0
    %445 = vmatpush1.xpose.msra.mxu0 0.0
    %446 = vmatprep.subr.mxu0 0.0
    %447 = vmatpush1.xpose.msra.mxu0 0.0
    %448 = vmatprep.subr.mxu0 0.0
    %449 = vmatpush1.xpose.msra.mxu0 0.0
    %450 = vmatprep.mubr.f32.mxu0 0.0
    %451 = vmatmul.mubr.f32.gmra.mrb[0].mxu0 %v378
    %v452 = vpop.f32.mrb[0].mxu0
    %v453 = vadd.f32 %v164, %v452
    %v454 = vpop.f32.mrb[0].mxu0
    %455 = vmatprep.mubr.f32.mxu0 0.0
    %456 = vmatmul.mubr.f32.gmra.mrb[0].mxu0 %v380
    %v457 = vpop.f32.mrb[0].mxu0
    %v458 = vadd.f32 %v165, %v457
    %v459 = vpop.f32.mrb[0].mxu0
    %460 = vdwg.mxu0
    %v461 = vsel %vm260, %v453, -inf
    %462 = vmax.xlane.f32.xlu0 %v461
    %v463 = vpop.xlane.xlu0 %462
    %v464 = vsel %vm260, %v458, -inf
    %465 = vmax.xlane.f32.xlu0 %v464
    %v466 = vpop.xlane.xlu0 %465
    %v467 = vsub.f32 %v453, %v463
    %v468 = vsub.f32 %v458, %v466
    %v469 = vmul.f32 %v467, 1.442695
    %v470 = vpow.pop %v469
    %v471 = vmul.f32 %v468, 1.442695
    %v472 = vpow.pop %v471
    %v473 = vsel %vm260, %v470, 0.0
    %474 = vadd.xlane.f32.xlu0 %v473
    %v475 = vpop.xlane.xlu0 %474
    %v476 = vsel %vm260, %v472, 0.0
    %477 = vadd.xlane.f32.xlu0 %v476
    %v478 = vpop.xlane.xlu0 %477
    %v479 = vrcp.pop %v475
    %v480 = vrcp.pop %v478
    %v481 = vmul.f32 %v470, %v479
    %v482 = vmul.f32 %v472, %v480
    %483 = vrot.lane.b32.xlu0 %v154, 56
    %v484 = vpop.permute.xlu0 %483
    %485 = vrot.lane.b32.xlu0 %v159, 56
    %v486 = vpop.permute.xlu0 %485
    %v490 = vsel %vm260, %v481, 0
    %v493 = vsel %vm260, %v482, 0
    %495 = vmatprep.subr.mxu0 0.0
    %496 = vmatpush1.msra.mxu0 %v484
    %497 = vmatprep.subr.mxu0 0.0
    %498 = vmatpush1.msra.mxu0 %v486
    %499 = vmatprep.subr.mxu0 0.0
    %500 = vmatpush1.msra.mxu0 0.0
    %501 = vmatprep.subr.mxu0 0.0
    %502 = vmatpush1.msra.mxu0 0.0
    %503 = vmatprep.subr.mxu0 0.0
    %504 = vmatpush1.msra.mxu0 0.0
    %505 = vmatprep.subr.mxu0 0.0
    %506 = vmatpush1.msra.mxu0 0.0
    %507 = vmatprep.subr.mxu0 0.0
    %508 = vmatpush1.msra.mxu0 0.0
    %509 = vmatprep.subr.mxu0 0.0
    %510 = vmatpush1.msra.mxu0 0.0
    %511 = vmatprep.subr.mxu0 0.0
    %512 = vmatpush1.msra.mxu0 0.0
    %513 = vmatprep.subr.mxu0 0.0
    %514 = vmatpush1.msra.mxu0 0.0
    %515 = vmatprep.subr.mxu0 0.0
    %516 = vmatpush1.msra.mxu0 0.0
    %517 = vmatprep.subr.mxu0 0.0
    %518 = vmatpush1.msra.mxu0 0.0
    %519 = vmatprep.subr.mxu0 0.0
    %520 = vmatpush1.msra.mxu0 0.0
    %521 = vmatprep.subr.mxu0 0.0
    %522 = vmatpush1.msra.mxu0 0.0
    %523 = vmatprep.subr.mxu0 0.0
    %524 = vmatpush1.msra.mxu0 0.0
    %525 = vmatprep.subr.mxu0 0.0
    %526 = vmatpush1.msra.mxu0 0.0
    %527 = vmatprep.subr.mxu0 0.0
    %528 = vmatpush1.msra.mxu0 0.0
    %529 = vmatprep.subr.mxu0 0.0
    %530 = vmatpush1.msra.mxu0 0.0
    %531 = vmatprep.subr.mxu0 0.0
    %532 = vmatpush1.msra.mxu0 0.0
    %533 = vmatprep.subr.mxu0 0.0
    %534 = vmatpush1.msra.mxu0 0.0
    %535 = vmatprep.subr.mxu0 0.0
    %536 = vmatpush1.msra.mxu0 0.0
    %537 = vmatprep.subr.mxu0 0.0
    %538 = vmatpush1.msra.mxu0 0.0
    %539 = vmatprep.subr.mxu0 0.0
    %540 = vmatpush1.msra.mxu0 0.0
    %541 = vmatprep.subr.mxu0 0.0
    %542 = vmatpush1.msra.mxu0 0.0
    %543 = vmatprep.subr.mxu0 0.0
    %544 = vmatpush1.msra.mxu0 0.0
    %545 = vmatprep.subr.mxu0 0.0
    %546 = vmatpush1.msra.mxu0 0.0
    %547 = vmatprep.subr.mxu0 0.0
    %548 = vmatpush1.msra.mxu0 0.0
    %549 = vmatprep.subr.mxu0 0.0
    %550 = vmatpush1.msra.mxu0 0.0
    %551 = vmatprep.subr.mxu0 0.0
    %552 = vmatpush1.msra.mxu0 0.0
    %553 = vmatprep.subr.mxu0 0.0
    %554 = vmatpush1.msra.mxu0 0.0
    %555 = vmatprep.subr.mxu0 0.0
    %556 = vmatpush1.msra.mxu0 0.0
    %557 = vmatprep.subr.mxu0 0.0
    %558 = vmatpush1.msra.mxu0 0.0
    %559 = vmatprep.mubr.f32.mxu0 0.0
    %560 = vmatmul.mubr.f32.gmra.mrb[0].mxu0 %v490
    %v561 = vpop.f32.mrb[0].mxu0
    %v562 = vadd.f32 0.0, %v561
    %v563 = vpop.f32.mrb[0].mxu0
    %564 = vmatprep.mubr.f32.mxu0 0.0
    %565 = vmatmul.mubr.f32.gmra.mrb[0].mxu0 %v493
    %v566 = vpop.f32.mrb[0].mxu0
    %v567 = vadd.f32 0.0, %v566
    %v568 = vpop.f32.mrb[0].mxu0
    %569 = vdwg.mxu0
    %570 = vrot.lane.b32.xlu0 %v154, 112
    %v571 = vpop.permute.xlu0 %570
    %572 = vrot.lane.b32.xlu0 %v159, 112
    %v573 = vpop.permute.xlu0 %572
    %574 = vrot.lane.b32.xlu0 %v154, 80
    %v575 = vpop.permute.xlu0 %574
    %576 = vrot.lane.b32.xlu0 %v159, 80
    %v577 = vpop.permute.xlu0 %576
    %v578 = vsel %vm176, %v571, 0
    %v580 = vsel %vm176, %v573, 0
    %v582 = vsel %vm176, %v575, 0
    %v584 = vsel %vm176, %v577, 0
    %586 = vmatprep.subr.mxu0 0.0
    %587 = vmatpush1.xpose.msra.mxu0 %v582
    %588 = vmatprep.subr.mxu0 0.0
    %589 = vmatpush1.xpose.msra.mxu0 %v584
    %590 = vmatprep.subr.mxu0 0.0
    %591 = vmatpush1.xpose.msra.mxu0 0.0
    %592 = vmatprep.subr.mxu0 0.0
    %593 = vmatpush1.xpose.msra.mxu0 0.0
    %594 = vmatprep.subr.mxu0 0.0
    %595 = vmatpush1.xpose.msra.mxu0 0.0
    %596 = vmatprep.subr.mxu0 0.0
    %597 = vmatpush1.xpose.msra.mxu0 0.0
    %598 = vmatprep.subr.mxu0 0.0
    %599 = vmatpush1.xpose.msra.mxu0 0.0
    %600 = vmatprep.subr.mxu0 0.0
    %601 = vmatpush1.xpose.msra.mxu0 0.0
    %602 = vmatprep.subr.mxu0 0.0
    %603 = vmatpush1.xpose.msra.mxu0 0.0
    %604 = vmatprep.subr.mxu0 0.0
    %605 = vmatpush1.xpose.msra.mxu0 0.0
    %606 = vmatprep.subr.mxu0 0.0
    %607 = vmatpush1.xpose.msra.mxu0 0.0
    %608 = vmatprep.subr.mxu0 0.0
    %609 = vmatpush1.xpose.msra.mxu0 0.0
    %610 = vmatprep.subr.mxu0 0.0
    %611 = vmatpush1.xpose.msra.mxu0 0.0
    %612 = vmatprep.subr.mxu0 0.0
    %613 = vmatpush1.xpose.msra.mxu0 0.0
    %614 = vmatprep.subr.mxu0 0.0
    %615 = vmatpush1.xpose.msra.mxu0 0.0
    %616 = vmatprep.subr.mxu0 0.0
    %617 = vmatpush1.xpose.msra.mxu0 0.0
    %618 = vmatprep.subr.mxu0 0.0
    %619 = vmatpush1.xpose.msra.mxu0 0.0
    %620 = vmatprep.subr.mxu0 0.0
    %621 = vmatpush1.xpose.msra.mxu0 0.0
    %622 = vmatprep.subr.mxu0 0.0
    %623 = vmatpush1.xpose.msra.mxu0 0.0
    %624 = vmatprep.subr.mxu0 0.0
    %625 = vmatpush1.xpose.msra.mxu0 0.0
    %626 = vmatprep.subr.mxu0 0.0
    %627 = vmatpush1.xpose.msra.mxu0 0.0
    %628 = vmatprep.subr.mxu0 0.0
    %629 = vmatpush1.xpose.msra.mxu0 0.0
    %630 = vmatprep.subr.mxu0 0.0
    %631 = vmatpush1.xpose.msra.mxu0 0.0
    %632 = vmatprep.subr.mxu0 0.0
    %633 = vmatpush1.xpose.msra.mxu0 0.0
    %634 = vmatprep.subr.mxu0 0.0
    %635 = vmatpush1.xpose.msra.mxu0 0.0
    %636 = vmatprep.subr.mxu0 0.0
    %637 = vmatpush1.xpose.msra.mxu0 0.0
    %638 = vmatprep.subr.mxu0 0.0
    %639 = vmatpush1.xpose.msra.mxu0 0.0
    %640 = vmatprep.subr.mxu0 0.0
    %641 = vmatpush1.xpose.msra.mxu0 0.0
    %642 = vmatprep.subr.mxu0 0.0
    %643 = vmatpush1.xpose.msra.mxu0 0.0
    %644 = vmatprep.subr.mxu0 0.0
    %645 = vmatpush1.xpose.msra.mxu0 0.0
    %646 = vmatprep.subr.mxu0 0.0
    %647 = vmatpush1.xpose.msra.mxu0 0.0
    %648 = vmatprep.subr.mxu0 0.0
    %649 = vmatpush1.xpose.msra.mxu0 0.0
    %650 = vmatprep.mubr.f32.mxu0 0.0
    %651 = vmatmul.mubr.f32.gmra.mrb[0].mxu0 %v578
    %v652 = vpop.f32.mrb[0].mxu0
    %v653 = vadd.f32 %v166, %v652
    %v654 = vpop.f32.mrb[0].mxu0
    %655 = vmatprep.mubr.f32.mxu0 0.0
    %656 = vmatmul.mubr.f32.gmra.mrb[0].mxu0 %v580
    %v657 = vpop.f32.mrb[0].mxu0
    %v658 = vadd.f32 %v167, %v657
    %v659 = vpop.f32.mrb[0].mxu0
    %660 = vdwg.mxu0
    %v661 = vsel %vm260, %v653, -inf
    %662 = vmax.xlane.f32.xlu0 %v661
    %v663 = vpop.xlane.xlu0 %662
    %v664 = vsel %vm260, %v658, -inf
    %665 = vmax.xlane.f32.xlu0 %v664
    %v666 = vpop.xlane.xlu0 %665
    %v667 = vsub.f32 %v653, %v663
    %v668 = vsub.f32 %v658, %v666
    %v669 = vmul.f32 %v667, 1.442695
    %v670 = vpow.pop %v669
    %v671 = vmul.f32 %v668, 1.442695
    %v672 = vpow.pop %v671
    %v673 = vsel %vm260, %v670, 0.0
    %674 = vadd.xlane.f32.xlu0 %v673
    %v675 = vpop.xlane.xlu0 %674
    %v676 = vsel %vm260, %v672, 0.0
    %677 = vadd.xlane.f32.xlu0 %v676
    %v678 = vpop.xlane.xlu0 %677
    %v679 = vrcp.pop %v675
    %v680 = vrcp.pop %v678
    %v681 = vmul.f32 %v670, %v679
    %v682 = vmul.f32 %v672, %v680
    %683 = vrot.lane.b32.xlu0 %v154, 48
    %v684 = vpop.permute.xlu0 %683
    %685 = vrot.lane.b32.xlu0 %v159, 48
    %v686 = vpop.permute.xlu0 %685
    %v690 = vsel %vm260, %v681, 0
    %v693 = vsel %vm260, %v682, 0
    %695 = vmatprep.subr.mxu0 0.0
    %696 = vmatpush1.msra.mxu0 %v684
    %697 = vmatprep.subr.mxu0 0.0
    %698 = vmatpush1.msra.mxu0 %v686
    %699 = vmatprep.subr.mxu0 0.0
    %700 = vmatpush1.msra.mxu0 0.0
    %701 = vmatprep.subr.mxu0 0.0
    %702 = vmatpush1.msra.mxu0 0.0
    %703 = vmatprep.subr.mxu0 0.0
    %704 = vmatpush1.msra.mxu0 0.0
    %705 = vmatprep.subr.mxu0 0.0
    %706 = vmatpush1.msra.mxu0 0.0
    %707 = vmatprep.subr.mxu0 0.0
    %708 = vmatpush1.msra.mxu0 0.0
    %709 = vmatprep.subr.mxu0 0.0
    %710 = vmatpush1.msra.mxu0 0.0
    %711 = vmatprep.subr.mxu0 0.0
    %712 = vmatpush1.msra.mxu0 0.0
    %713 = vmatprep.subr.mxu0 0.0
    %714 = vmatpush1.msra.mxu0 0.0
    %715 = vmatprep.subr.mxu0 0.0
    %716 = vmatpush1.msra.mxu0 0.0
    %717 = vmatprep.subr.mxu0 0.0
    %718 = vmatpush1.msra.mxu0 0.0
    %719 = vmatprep.subr.mxu0 0.0
    %720 = vmatpush1.msra.mxu0 0.0
    %721 = vmatprep.subr.mxu0 0.0
    %722 = vmatpush1.msra.mxu0 0.0
    %723 = vmatprep.subr.mxu0 0.0
    %724 = vmatpush1.msra.mxu0 0.0
    %725 = vmatprep.subr.mxu0 0.0
    %726 = vmatpush1.msra.mxu0 0.0
    %727 = vmatprep.subr.mxu0 0.0
    %728 = vmatpush1.msra.mxu0 0.0
    %729 = vmatprep.subr.mxu0 0.0
    %730 = vmatpush1.msra.mxu0 0.0
    %731 = vmatprep.subr.mxu0 0.0
    %732 = vmatpush1.msra.mxu0 0.0
    %733 = vmatprep.subr.mxu0 0.0
    %734 = vmatpush1.msra.mxu0 0.0
    %735 = vmatprep.subr.mxu0 0.0
    %736 = vmatpush1.msra.mxu0 0.0
    %737 = vmatprep.subr.mxu0 0.0
    %738 = vmatpush1.msra.mxu0 0.0
    %739 = vmatprep.subr.mxu0 0.0
    %740 = vmatpush1.msra.mxu0 0.0
    %741 = vmatprep.subr.mxu0 0.0
    %742 = vmatpush1.msra.mxu0 0.0
    %743 = vmatprep.subr.mxu0 0.0
    %744 = vmatpush1.msra.mxu0 0.0
    %745 = vmatprep.subr.mxu0 0.0
    %746 = vmatpush1.msra.mxu0 0.0
    %747 = vmatprep.subr.mxu0 0.0
    %748 = vmatpush1.msra.mxu0 0.0
    %749 = vmatprep.subr.mxu0 0.0
    %750 = vmatpush1.msra.mxu0 0.0
    %751 = vmatprep.subr.mxu0 0.0
    %752 = vmatpush1.msra.mxu0 0.0
    %753 = vmatprep.subr.mxu0 0.0
    %754 = vmatpush1.msra.mxu0 0.0
    %755 = vmatprep.subr.mxu0 0.0
    %756 = vmatpush1.msra.mxu0 0.0
    %757 = vmatprep.subr.mxu0 0.0
    %758 = vmatpush1.msra.mxu0 0.0
    %759 = vmatprep.mubr.f32.mxu0 0.0
    %760 = vmatmul.mubr.f32.gmra.mrb[0].mxu0 %v690
    %v761 = vpop.f32.mrb[0].mxu0
    %v762 = vadd.f32 0.0, %v761
    %v763 = vpop.f32.mrb[0].mxu0
    %764 = vmatprep.mubr.f32.mxu0 0.0
    %765 = vmatmul.mubr.f32.gmra.mrb[0].mxu0 %v693
    %v766 = vpop.f32.mrb[0].mxu0
    %v767 = vadd.f32 0.0, %v766
    %v768 = vpop.f32.mrb[0].mxu0
    %769 = vdwg.mxu0
    %770 = vrot.lane.b32.xlu0 %v154, 104
    %v771 = vpop.permute.xlu0 %770
    %772 = vrot.lane.b32.xlu0 %v159, 104
    %v773 = vpop.permute.xlu0 %772
    %774 = vrot.lane.b32.xlu0 %v154, 72
    %v775 = vpop.permute.xlu0 %774
    %776 = vrot.lane.b32.xlu0 %v159, 72
    %v777 = vpop.permute.xlu0 %776
    %v778 = vsel %vm176, %v771, 0
    %v780 = vsel %vm176, %v773, 0
    %v782 = vsel %vm176, %v775, 0
    %v784 = vsel %vm176, %v777, 0
    %786 = vmatprep.subr.mxu0 0.0
    %787 = vmatpush1.xpose.msra.mxu0 %v782
    %788 = vmatprep.subr.mxu0 0.0
    %789 = vmatpush1.xpose.msra.mxu0 %v784
    %790 = vmatprep.subr.mxu0 0.0
    %791 = vmatpush1.xpose.msra.mxu0 0.0
    %792 = vmatprep.subr.mxu0 0.0
    %793 = vmatpush1.xpose.msra.mxu0 0.0
    %794 = vmatprep.subr.mxu0 0.0
    %795 = vmatpush1.xpose.msra.mxu0 0.0
    %796 = vmatprep.subr.mxu0 0.0
    %797 = vmatpush1.xpose.msra.mxu0 0.0
    %798 = vmatprep.subr.mxu0 0.0
    %799 = vmatpush1.xpose.msra.mxu0 0.0
    %800 = vmatprep.subr.mxu0 0.0
    %801 = vmatpush1.xpose.msra.mxu0 0.0
    %802 = vmatprep.subr.mxu0 0.0
    %803 = vmatpush1.xpose.msra.mxu0 0.0
    %804 = vmatprep.subr.mxu0 0.0
    %805 = vmatpush1.xpose.msra.mxu0 0.0
    %806 = vmatprep.subr.mxu0 0.0
    %807 = vmatpush1.xpose.msra.mxu0 0.0
    %808 = vmatprep.subr.mxu0 0.0
    %809 = vmatpush1.xpose.msra.mxu0 0.0
    %810 = vmatprep.subr.mxu0 0.0
    %811 = vmatpush1.xpose.msra.mxu0 0.0
    %812 = vmatprep.subr.mxu0 0.0
    %813 = vmatpush1.xpose.msra.mxu0 0.0
    %814 = vmatprep.subr.mxu0 0.0
    %815 = vmatpush1.xpose.msra.mxu0 0.0
    %816 = vmatprep.subr.mxu0 0.0
    %817 = vmatpush1.xpose.msra.mxu0 0.0
    %818 = vmatprep.subr.mxu0 0.0
    %819 = vmatpush1.xpose.msra.mxu0 0.0
    %820 = vmatprep.subr.mxu0 0.0
    %821 = vmatpush1.xpose.msra.mxu0 0.0
    %822 = vmatprep.subr.mxu0 0.0
    %823 = vmatpush1.xpose.msra.mxu0 0.0
    %824 = vmatprep.subr.mxu0 0.0
    %825 = vmatpush1.xpose.msra.mxu0 0.0
    %826 = vmatprep.subr.mxu0 0.0
    %827 = vmatpush1.xpose.msra.mxu0 0.0
    %828 = vmatprep.subr.mxu0 0.0
    %829 = vmatpush1.xpose.msra.mxu0 0.0
    %830 = vmatprep.subr.mxu0 0.0
    %831 = vmatpush1.xpose.msra.mxu0 0.0
    %832 = vmatprep.subr.mxu0 0.0
    %833 = vmatpush1.xpose.msra.mxu0 0.0
    %834 = vmatprep.subr.mxu0 0.0
    %835 = vmatpush1.xpose.msra.mxu0 0.0
    %836 = vmatprep.subr.mxu0 0.0
    %837 = vmatpush1.xpose.msra.mxu0 0.0
    %838 = vmatprep.subr.mxu0 0.0
    %839 = vmatpush1.xpose.msra.mxu0 0.0
    %840 = vmatprep.subr.mxu0 0.0
    %841 = vmatpush1.xpose.msra.mxu0 0.0
    %842 = vmatprep.subr.mxu0 0.0
    %843 = vmatpush1.xpose.msra.mxu0 0.0
    %844 = vmatprep.subr.mxu0 0.0
    %845 = vmatpush1.xpose.msra.mxu0 0.0
    %846 = vmatprep.subr.mxu0 0.0
    %847 = vmatpush1.xpose.msra.mxu0 0.0
    %848 = vmatprep.subr.mxu0 0.0
    %849 = vmatpush1.xpose.msra.mxu0 0.0
    %850 = vmatprep.mubr.f32.mxu0 0.0
    %851 = vmatmul.mubr.f32.gmra.mrb[0].mxu0 %v778
    %v852 = vpop.f32.mrb[0].mxu0
    %v853 = vadd.f32 %v168, %v852
    %v854 = vpop.f32.mrb[0].mxu0
    %855 = vmatprep.mubr.f32.mxu0 0.0
    %856 = vmatmul.mubr.f32.gmra.mrb[0].mxu0 %v780
    %v857 = vpop.f32.mrb[0].mxu0
    %v858 = vadd.f32 %v169, %v857
    %v859 = vpop.f32.mrb[0].mxu0
    %860 = vdwg.mxu0
    %v861 = vsel %vm260, %v853, -inf
    %862 = vmax.xlane.f32.xlu0 %v861
    %v863 = vpop.xlane.xlu0 %862
    %v864 = vsel %vm260, %v858, -inf
    %865 = vmax.xlane.f32.xlu0 %v864
    %v866 = vpop.xlane.xlu0 %865
    %v867 = vsub.f32 %v853, %v863
    %v868 = vsub.f32 %v858, %v866
    %v869 = vmul.f32 %v867, 1.442695
    %v870 = vpow.pop %v869
    %v871 = vmul.f32 %v868, 1.442695
    %v872 = vpow.pop %v871
    %v873 = vsel %vm260, %v870, 0.0
    %874 = vadd.xlane.f32.xlu0 %v873
    %v875 = vpop.xlane.xlu0 %874
    %v876 = vsel %vm260, %v872, 0.0
    %877 = vadd.xlane.f32.xlu0 %v876
    %v878 = vpop.xlane.xlu0 %877
    %v879 = vrcp.pop %v875
    %v880 = vrcp.pop %v878
    %v881 = vmul.f32 %v870, %v879
    %v882 = vmul.f32 %v872, %v880
    %883 = vrot.lane.b32.xlu0 %v154, 40
    %v884 = vpop.permute.xlu0 %883
    %885 = vrot.lane.b32.xlu0 %v159, 40
    %v886 = vpop.permute.xlu0 %885
    %v890 = vsel %vm260, %v881, 0
    %v893 = vsel %vm260, %v882, 0
    %895 = vmatprep.subr.mxu0 0.0
    %896 = vmatpush1.msra.mxu0 %v884
    %897 = vmatprep.subr.mxu0 0.0
    %898 = vmatpush1.msra.mxu0 %v886
    %899 = vmatprep.subr.mxu0 0.0
    %900 = vmatpush1.msra.mxu0 0.0
    %901 = vmatprep.subr.mxu0 0.0
    %902 = vmatpush1.msra.mxu0 0.0
    %903 = vmatprep.subr.mxu0 0.0
    %904 = vmatpush1.msra.mxu0 0.0
    %905 = vmatprep.subr.mxu0 0.0
    %906 = vmatpush1.msra.mxu0 0.0
    %907 = vmatprep.subr.mxu0 0.0
    %908 = vmatpush1.msra.mxu0 0.0
    %909 = vmatprep.subr.mxu0 0.0
    %910 = vmatpush1.msra.mxu0 0.0
    %911 = vmatprep.subr.mxu0 0.0
    %912 = vmatpush1.msra.mxu0 0.0
    %913 = vmatprep.subr.mxu0 0.0
    %914 = vmatpush1.msra.mxu0 0.0
    %915 = vmatprep.subr.mxu0 0.0
    %916 = vmatpush1.msra.mxu0 0.0
    %917 = vmatprep.subr.mxu0 0.0
    %918 = vmatpush1.msra.mxu0 0.0
    %919 = vmatprep.subr.mxu0 0.0
    %920 = vmatpush1.msra.mxu0 0.0
    %921 = vmatprep.subr.mxu0 0.0
    %922 = vmatpush1.msra.mxu0 0.0
    %923 = vmatprep.subr.mxu0 0.0
    %924 = vmatpush1.msra.mxu0 0.0
    %925 = vmatprep.subr.mxu0 0.0
    %926 = vmatpush1.msra.mxu0 0.0
    %927 = vmatprep.subr.mxu0 0.0
    %928 = vmatpush1.msra.mxu0 0.0
    %929 = vmatprep.subr.mxu0 0.0
    %930 = vmatpush1.msra.mxu0 0.0
    %931 = vmatprep.subr.mxu0 0.0
    %932 = vmatpush1.msra.mxu0 0.0
    %933 = vmatprep.subr.mxu0 0.0
    %934 = vmatpush1.msra.mxu0 0.0
    %935 = vmatprep.subr.mxu0 0.0
    %936 = vmatpush1.msra.mxu0 0.0
    %937 = vmatprep.subr.mxu0 0.0
    %938 = vmatpush1.msra.mxu0 0.0
    %939 = vmatprep.subr.mxu0 0.0
    %940 = vmatpush1.msra.mxu0 0.0
    %941 = vmatprep.subr.mxu0 0.0
    %942 = vmatpush1.msra.mxu0 0.0
    %943 = vmatprep.subr.mxu0 0.0
    %944 = vmatpush1.msra.mxu0 0.0
    %945 = vmatprep.subr.mxu0 0.0
    %946 = vmatpush1.msra.mxu0 0.0
    %947 = vmatprep.subr.mxu0 0.0
    %948 = vmatpush1.msra.mxu0 0.0
    %949 = vmatprep.subr.mxu0 0.0
    %950 = vmatpush1.msra.mxu0 0.0
    %951 = vmatprep.subr.mxu0 0.0
    %952 = vmatpush1.msra.mxu0 0.0
    %953 = vmatprep.subr.mxu0 0.0
    %954 = vmatpush1.msra.mxu0 0.0
    %955 = vmatprep.subr.mxu0 0.0
    %956 = vmatpush1.msra.mxu0 0.0
    %957 = vmatprep.subr.mxu0 0.0
    %958 = vmatpush1.msra.mxu0 0.0
    %959 = vmatprep.mubr.f32.mxu0 0.0
    %960 = vmatmul.mubr.f32.gmra.mrb[0].mxu0 %v890
    %v961 = vpop.f32.mrb[0].mxu0
    %v962 = vadd.f32 0.0, %v961
    %v963 = vpop.f32.mrb[0].mxu0
    %964 = vmatprep.mubr.f32.mxu0 0.0
    %965 = vmatmul.mubr.f32.gmra.mrb[0].mxu0 %v893
    %v966 = vpop.f32.mrb[0].mxu0
    %v967 = vadd.f32 0.0, %v966
    %v968 = vpop.f32.mrb[0].mxu0
    %969 = vdwg.mxu0
    %972 = vrot.lane.b32.xlu0 %v562, 8
    %v973 = vpop.permute.xlu0 %972
    %974 = vrot.lane.b32.xlu0 %v567, 8
    %v975 = vpop.permute.xlu0 %974
    %980 = vrot.lane.b32.xlu0 %v762, 16
    %v981 = vpop.permute.xlu0 %980
    %982 = vrot.lane.b32.xlu0 %v767, 16
    %v983 = vpop.permute.xlu0 %982
    %988 = vrot.lane.b32.xlu0 %v962, 24
    %v989 = vpop.permute.xlu0 %988
    %990 = vrot.lane.b32.xlu0 %v967, 24
    %v991 = vpop.permute.xlu0 %990
    %v994 = vsel %vm176, %v362, %v973
    %v995 = vsel %vm176, %v367, %v975
    %v996 = vsel %vm260, %v994, %v981
    %v997 = vsel %vm260, %v995, %v983
    %vm998 = vcmask 195584
    %v999 = vsel %vm998, %v996, %v989
    %v1000 = vsel %vm998, %v997, %v991
    %v1002 = vsel %vm55, %v999, 0
    %v1005 = vsel %vm55, %v1000, 0
    %1007 = vmatprep.subr.mxu0 0.0
    %1008 = vmatpush1.msra.mxu0 %v41
    %1009 = vmatprep.subr.mxu0 0.0
    %1010 = vmatpush1.msra.mxu0 %v42
    %1011 = vmatprep.subr.mxu0 0.0
    %1012 = vmatpush1.msra.mxu0 %v43
    %1013 = vmatprep.subr.mxu0 0.0
    %1014 = vmatpush1.msra.mxu0 %v44
    %1015 = vmatprep.subr.mxu0 0.0
    %1016 = vmatpush1.msra.mxu0 0.0
    %1017 = vmatprep.subr.mxu0 0.0
    %1018 = vmatpush1.msra.mxu0 0.0
    %1019 = vmatprep.subr.mxu0 0.0
    %1020 = vmatpush1.msra.mxu0 0.0
    %1021 = vmatprep.subr.mxu0 0.0
    %1022 = vmatpush1.msra.mxu0 0.0
    %1023 = vmatprep.subr.mxu0 0.0
    %1024 = vmatpush1.msra.mxu0 0.0
    %1025 = vmatprep.subr.mxu0 0.0
    %1026 = vmatpush1.msra.mxu0 0.0
    %1027 = vmatprep.subr.mxu0 0.0
    %1028 = vmatpush1.msra.mxu0 0.0
    %1029 = vmatprep.subr.mxu0 0.0
    %1030 = vmatpush1.msra.mxu0 0.0
    %1031 = vmatprep.subr.mxu0 0.0
    %1032 = vmatpush1.msra.mxu0 0.0
    %1033 = vmatprep.subr.mxu0 0.0
    %1034 = vmatpush1.msra.mxu0 0.0
    %1035 = vmatprep.subr.mxu0 0.0
    %1036 = vmatpush1.msra.mxu0 0.0
    %1037 = vmatprep.subr.mxu0 0.0
    %1038 = vmatpush1.msra.mxu0 0.0
    %1039 = vmatprep.subr.mxu0 0.0
    %1040 = vmatpush1.msra.mxu0 0.0
    %1041 = vmatprep.subr.mxu0 0.0
    %1042 = vmatpush1.msra.mxu0 0.0
    %1043 = vmatprep.subr.mxu0 0.0
    %1044 = vmatpush1.msra.mxu0 0.0
    %1045 = vmatprep.subr.mxu0 0.0
    %1046 = vmatpush1.msra.mxu0 0.0
    %1047 = vmatprep.subr.mxu0 0.0
    %1048 = vmatpush1.msra.mxu0 0.0
    %1049 = vmatprep.subr.mxu0 0.0
    %1050 = vmatpush1.msra.mxu0 0.0
    %1051 = vmatprep.subr.mxu0 0.0
    %1052 = vmatpush1.msra.mxu0 0.0
    %1053 = vmatprep.subr.mxu0 0.0
    %1054 = vmatpush1.msra.mxu0 0.0
    %1055 = vmatprep.subr.mxu0 0.0
    %1056 = vmatpush1.msra.mxu0 0.0
    %1057 = vmatprep.subr.mxu0 0.0
    %1058 = vmatpush1.msra.mxu0 0.0
    %1059 = vmatprep.subr.mxu0 0.0
    %1060 = vmatpush1.msra.mxu0 0.0
    %1061 = vmatprep.subr.mxu0 0.0
    %1062 = vmatpush1.msra.mxu0 0.0
    %1063 = vmatprep.subr.mxu0 0.0
    %1064 = vmatpush1.msra.mxu0 0.0
    %1065 = vmatprep.subr.mxu0 0.0
    %1066 = vmatpush1.msra.mxu0 0.0
    %1067 = vmatprep.subr.mxu0 0.0
    %1068 = vmatpush1.msra.mxu0 0.0
    %1069 = vmatprep.subr.mxu0 0.0
    %1070 = vmatpush1.msra.mxu0 0.0
    %1071 = vmatprep.mubr.f32.mxu0 0.0
    %1072 = vmatmul.mubr.f32.gmra.mrb[0].mxu0 %v1002
    %v1073 = vpop.f32.mrb[0].mxu0
    %v1074 = vadd.f32 0.0, %v1073
    %v1075 = vpop.f32.mrb[0].mxu0
    %1076 = vmatprep.mubr.f32.mxu0 0.0
    %1077 = vmatmul.mubr.f32.gmra.mrb[0].mxu0 %v1005
    %v1078 = vpop.f32.mrb[0].mxu0
    %v1079 = vadd.f32 0.0, %v1078
    %v1080 = vpop.f32.mrb[0].mxu0
    %1081 = vdwg.mxu0
    %v1082 = vadd.f32 %v38, %v1074
    %v1083 = vadd.f32 %v39, %v1079
    %v1084 = vmul.f32 %v1082, 0.95238096
    %v1085 = vmul.f32 %v1083, 0.95238096
    %v1086 = vmul.f32 %v1084, %v1084
    %v1087 = vmul.f32 %v1085, %v1085
    %v1088 = vsel %vm55, %v1086, 0.0
    %1089 = vadd.xlane.f32.xlu0 %v1088
    %v1090 = vpop.xlane.xlu0 %1089
    %v1091 = vsel %vm55, %v1087, 0.0
    %1092 = vadd.xlane.f32.xlu0 %v1091
    %v1093 = vpop.xlane.xlu0 %1092
    %v1094 = vmul.f32 %v1090, %v62
    %v1095 = vmul.f32 %v1093, %v62
    %v1096 = vadd.f32 %v1094, 1e-06
    %v1097 = vadd.f32 %v1095, 1e-06
    %v1098 = vrsqrt.pop %v1096
    %v1099 = vrsqrt.pop %v1097
    %v1100 = vmul.f32 %v1084, %v1098
    %v1101 = vmul.f32 %v1085, %v1099
    %v1102 = vlaneseq
    %v1103 = vshrl.u32 %v1102, 7
    %v1104 = vsub.s32 1, %v1103
    %v1105 = vrot.slane %v40, %v1104
    %v1106 = vmul.f32 %v1100, %v1105
    %v1107 = vmul.f32 %v1101, %v1105
    %v1108 = vld [vmem:[%s4] sm:$0xff]
    %v1109 = vld [vmem:[%s4 + $0x8] sm:$0xff]
    %v1110 = vld [vmem:[%s4 + $0x10] sm:$0xff]
    %v1111 = vld [vmem:[%s4 + $0x18] sm:$0xff]
    %v1113 = vsel %vm55, %v1106, 0
    %v1116 = vsel %vm55, %v1107, 0
    %1118 = vmatprep.subr.mxu0 0.0
    %1119 = vmatpush1.msra.mxu0 %v1108
    %1120 = vmatprep.subr.mxu0 0.0
    %1121 = vmatpush1.msra.mxu0 %v1109
    %1122 = vmatprep.subr.mxu0 0.0
    %1123 = vmatpush1.msra.mxu0 %v1110
    %1124 = vmatprep.subr.mxu0 0.0
    %1125 = vmatpush1.msra.mxu0 %v1111
    %1126 = vmatprep.subr.mxu0 0.0
    %1127 = vmatpush1.msra.mxu0 0.0
    %1128 = vmatprep.subr.mxu0 0.0
    %1129 = vmatpush1.msra.mxu0 0.0
    %1130 = vmatprep.subr.mxu0 0.0
    %1131 = vmatpush1.msra.mxu0 0.0
    %1132 = vmatprep.subr.mxu0 0.0
    %1133 = vmatpush1.msra.mxu0 0.0
    %1134 = vmatprep.subr.mxu0 0.0
    %1135 = vmatpush1.msra.mxu0 0.0
    %1136 = vmatprep.subr.mxu0 0.0
    %1137 = vmatpush1.msra.mxu0 0.0
    %1138 = vmatprep.subr.mxu0 0.0
    %1139 = vmatpush1.msra.mxu0 0.0
    %1140 = vmatprep.subr.mxu0 0.0
    %1141 = vmatpush1.msra.mxu0 0.0
    %1142 = vmatprep.subr.mxu0 0.0
    %1143 = vmatpush1.msra.mxu0 0.0
    %1144 = vmatprep.subr.mxu0 0.0
    %1145 = vmatpush1.msra.mxu0 0.0
    %1146 = vmatprep.subr.mxu0 0.0
    %1147 = vmatpush1.msra.mxu0 0.0
    %1148 = vmatprep.subr.mxu0 0.0
    %1149 = vmatpush1.msra.mxu0 0.0
    %1150 = vmatprep.subr.mxu0 0.0
    %1151 = vmatpush1.msra.mxu0 0.0
    %1152 = vmatprep.subr.mxu0 0.0
    %1153 = vmatpush1.msra.mxu0 0.0
    %1154 = vmatprep.subr.mxu0 0.0
    %1155 = vmatpush1.msra.mxu0 0.0
    %1156 = vmatprep.subr.mxu0 0.0
    %1157 = vmatpush1.msra.mxu0 0.0
    %1158 = vmatprep.subr.mxu0 0.0
    %1159 = vmatpush1.msra.mxu0 0.0
    %1160 = vmatprep.subr.mxu0 0.0
    %1161 = vmatpush1.msra.mxu0 0.0
    %1162 = vmatprep.subr.mxu0 0.0
    %1163 = vmatpush1.msra.mxu0 0.0
    %1164 = vmatprep.subr.mxu0 0.0
    %1165 = vmatpush1.msra.mxu0 0.0
    %1166 = vmatprep.subr.mxu0 0.0
    %1167 = vmatpush1.msra.mxu0 0.0
    %1168 = vmatprep.subr.mxu0 0.0
    %1169 = vmatpush1.msra.mxu0 0.0
    %1170 = vmatprep.subr.mxu0 0.0
    %1171 = vmatpush1.msra.mxu0 0.0
    %1172 = vmatprep.subr.mxu0 0.0
    %1173 = vmatpush1.msra.mxu0 0.0
    %1174 = vmatprep.subr.mxu0 0.0
    %1175 = vmatpush1.msra.mxu0 0.0
    %1176 = vmatprep.subr.mxu0 0.0
    %1177 = vmatpush1.msra.mxu0 0.0
    %1178 = vmatprep.subr.mxu0 0.0
    %1179 = vmatpush1.msra.mxu0 0.0
    %1180 = vmatprep.subr.mxu0 0.0
    %1181 = vmatpush1.msra.mxu0 0.0
    %1182 = vmatprep.mubr.f32.mxu0 0.0
    %1183 = vmatmul.mubr.f32.gmra.mrb[0].mxu0 %v1113
    %v1184 = vpop.f32.mrb[0].mxu0
    %v1185 = vadd.f32 0.0, %v1184
    %v1186 = vpop.f32.mrb[0].mxu0
    %1187 = vmatprep.mubr.f32.mxu0 0.0
    %1188 = vmatmul.mubr.f32.gmra.mrb[0].mxu0 %v1116
    %v1189 = vpop.f32.mrb[0].mxu0
    %v1190 = vadd.f32 0.0, %v1189
    %v1191 = vpop.f32.mrb[0].mxu0
    %1192 = vdwg.mxu0
    %v1193 = vmul.f32 %v1185, 0.5
    %v1194 = vmul.f32 %v1190, 0.5
    %v1195 = vmul.f32 %v1185, 0.70710677
    %v1196 = vmul.f32 %v1190, 0.70710677
    %vm1197 = vcmp.ge.f32.partialorder %v1195, 0.0
    %vm1198 = vcmp.ge.f32.partialorder %v1196, 0.0
    %v1199 = vsel %vm1197, 1.0, -1.0
    %v1200 = vsel %vm1198, 1.0, -1.0
    %v1201 = vand.u32 2147483647, %v1195
    %v1202 = vand.u32 2147483647, %v1196
    %v1203 = vmul.f32 %v1201, 0.3275911
    %v1204 = vmul.f32 %v1202, 0.3275911
    %v1205 = vadd.f32 %v1203, 1.0
    %v1206 = vadd.f32 %v1204, 1.0
    %v1207 = vrcp.pop %v1205
    %v1208 = vmul.f32 1.0, %v1207
    %v1209 = vrcp.pop %v1206
    %v1210 = vmul.f32 1.0, %v1209
    %v1211 = vmul.f32 %v1208, 1.0614054
    %v1212 = vmul.f32 %v1210, 1.0614054
    %v1213 = vadd.f32 %v1211, -1.4531521
    %v1214 = vadd.f32 %v1212, -1.4531521
    %v1215 = vmul.f32 %v1213, %v1208
    %v1216 = vmul.f32 %v1214, %v1210
    %v1217 = vadd.f32 %v1215, 1.4214138
    %v1218 = vadd.f32 %v1216, 1.4214138
    %v1219 = vmul.f32 %v1217, %v1208
    %v1220 = vmul.f32 %v1218, %v1210
    %v1221 = vadd.f32 %v1219, -0.28449672
    %v1222 = vadd.f32 %v1220, -0.28449672
    %v1223 = vmul.f32 %v1221, %v1208
    %v1224 = vmul.f32 %v1222, %v1210
    %v1225 = vadd.f32 %v1223, 0.2548296
    %v1226 = vadd.f32 %v1224, 0.2548296
    %v1227 = vmul.f32 %v1225, %v1208
    %v1228 = vmul.f32 %v1226, %v1210
    %v1229 = vsub.f32 0.0, %v1201
    %v1230 = vsub.f32 0.0, %v1202
    %v1231 = vmul.f32 %v1229, %v1201
    %v1232 = vmul.f32 %v1230, %v1202
    %v1233 = vmul.f32 %v1231, 1.442695
    %v1234 = vpow.pop %v1233
    %v1235 = vmul.f32 %v1232, 1.442695
    %v1236 = vpow.pop %v1235
    %v1237 = vmul.f32 %v1227, %v1234
    %v1238 = vmul.f32 %v1228, %v1236
    %v1239 = vsub.f32 1.0, %v1237
    %v1240 = vsub.f32 1.0, %v1238
    %v1241 = vmul.f32 %v1199, %v1239
    %v1242 = vmul.f32 %v1200, %v1240
    %v1243 = vadd.f32 %v1241, 1.0
    %v1244 = vadd.f32 %v1242, 1.0
    %v1245 = vmul.f32 %v1193, %v1243
    %v1246 = vmul.f32 %v1194, %v1244
    %1249 = vrot.lane.b32.xlu0 %v1185, 64
    %v1250 = vpop.permute.xlu0 %1249
    %1251 = vrot.lane.b32.xlu0 %v1190, 64
    %v1252 = vpop.permute.xlu0 %1251
    %v1255 = vmul.f32 %v1245, %v1250
    %v1256 = vmul.f32 %v1246, %v1252
    %vm1257 = vcmask 523264
    %v1259 = vsel %vm1257, %v1255, 0
    %v1262 = vsel %vm1257, %v1256, 0
    %1264 = vmatprep.subr.mxu0 0.0
    %1265 = vmatpush1.msra.mxu0 %v45
    %1266 = vmatprep.subr.mxu0 0.0
    %1267 = vmatpush1.msra.mxu0 %v46
    %1268 = vmatprep.subr.mxu0 0.0
    %1269 = vmatpush1.msra.mxu0 %v47
    %1270 = vmatprep.subr.mxu0 0.0
    %1271 = vmatpush1.msra.mxu0 %v48
    %1272 = vmatprep.subr.mxu0 0.0
    %1273 = vmatpush1.msra.mxu0 %v49
    %1274 = vmatprep.subr.mxu0 0.0
    %1275 = vmatpush1.msra.mxu0 %v50
    %1276 = vmatprep.subr.mxu0 0.0
    %1277 = vmatpush1.msra.mxu0 %v51
    %1278 = vmatprep.subr.mxu0 0.0
    %1279 = vmatpush1.msra.mxu0 %v52
    %1280 = vmatprep.subr.mxu0 0.0
    %1281 = vmatpush1.msra.mxu0 0.0
    %1282 = vmatprep.subr.mxu0 0.0
    %1283 = vmatpush1.msra.mxu0 0.0
    %1284 = vmatprep.subr.mxu0 0.0
    %1285 = vmatpush1.msra.mxu0 0.0
    %1286 = vmatprep.subr.mxu0 0.0
    %1287 = vmatpush1.msra.mxu0 0.0
    %1288 = vmatprep.subr.mxu0 0.0
    %1289 = vmatpush1.msra.mxu0 0.0
    %1290 = vmatprep.subr.mxu0 0.0
    %1291 = vmatpush1.msra.mxu0 0.0
    %1292 = vmatprep.subr.mxu0 0.0
    %1293 = vmatpush1.msra.mxu0 0.0
    %1294 = vmatprep.subr.mxu0 0.0
    %1295 = vmatpush1.msra.mxu0 0.0
    %1296 = vmatprep.subr.mxu0 0.0
    %1297 = vmatpush1.msra.mxu0 0.0
    %1298 = vmatprep.subr.mxu0 0.0
    %1299 = vmatpush1.msra.mxu0 0.0
    %1300 = vmatprep.subr.mxu0 0.0
    %1301 = vmatpush1.msra.mxu0 0.0
    %1302 = vmatprep.subr.mxu0 0.0
    %1303 = vmatpush1.msra.mxu0 0.0
    %1304 = vmatprep.subr.mxu0 0.0
    %1305 = vmatpush1.msra.mxu0 0.0
    %1306 = vmatprep.subr.mxu0 0.0
    %1307 = vmatpush1.msra.mxu0 0.0
    %1308 = vmatprep.subr.mxu0 0.0
    %1309 = vmatpush1.msra.mxu0 0.0
    %1310 = vmatprep.subr.mxu0 0.0
    %1311 = vmatpush1.msra.mxu0 0.0
    %1312 = vmatprep.subr.mxu0 0.0
    %1313 = vmatpush1.msra.mxu0 0.0
    %1314 = vmatprep.subr.mxu0 0.0
    %1315 = vmatpush1.msra.mxu0 0.0
    %1316 = vmatprep.subr.mxu0 0.0
    %1317 = vmatpush1.msra.mxu0 0.0
    %1318 = vmatprep.subr.mxu0 0.0
    %1319 = vmatpush1.msra.mxu0 0.0
    %1320 = vmatprep.subr.mxu0 0.0
    %1321 = vmatpush1.msra.mxu0 0.0
    %1322 = vmatprep.subr.mxu0 0.0
    %1323 = vmatpush1.msra.mxu0 0.0
    %1324 = vmatprep.subr.mxu0 0.0
    %1325 = vmatpush1.msra.mxu0 0.0
    %1326 = vmatprep.subr.mxu0 0.0
    %1327 = vmatpush1.msra.mxu0 0.0
    %1328 = vmatprep.mubr.f32.mxu0 0.0
    %1329 = vmatmul.mubr.f32.gmra.mrb[0].mxu0 %v1259
    %v1330 = vpop.f32.mrb[0].mxu0
    %v1331 = vadd.f32 0.0, %v1330
    %v1332 = vpop.f32.mrb[0].mxu0
    %1333 = vmatprep.mubr.f32.mxu0 0.0
    %1334 = vmatmul.mubr.f32.gmra.mrb[0].mxu0 %v1262
    %v1335 = vpop.f32.mrb[0].mxu0
    %v1336 = vadd.f32 0.0, %v1335
    %v1337 = vpop.f32.mrb[0].mxu0
    %1338 = vdwg.mxu0
    %v1339 = vadd.f32 %v1084, %v1331
    %v1340 = vadd.f32 %v1085, %v1336
    %v1341 = vmul.f32 %v1339, 0.95238096
    %v1342 = vmul.f32 %v1340, 0.95238096
    %1343 = vst.msk [vmem:[#allocation5] sm:$0xff] %vm55, %v1341
    %1344 = vst.msk [vmem:[#allocation5 + $0x8] sm:$0xff] %vm55, %v1342
    // Predicated region
    $region30: #{_fused_block_call.1} parent=1 // pred_check
      _
    $region31: #{_fused_block_call.1} parent=1 // pred_check_branch
      %1346 = sbr.rel (0) target = $region33
    $region32: #{_fused_block_call.1} parent=1 // pred_region
      %s1348 = ssub.s32 256, 256
      %1349 = vsyncadd [#allocation4], %s1348
      %s1350 = sshll.u32 [#allocation5], 4
      %s1351 = int_to_ptr.vmem [resolvable:$true] %s1350
      %1356 = dma.vmem_to_hbm [thread:$0]  %s1351, 256, %s6, [#allocation4], 128, 128, 8
    $region33: #{_fused_block_call.1} parent=1 // pred_fallthru
      _
    // Predicated region
    $region34: #{_fused_block_call.1} parent=1 // pred_check
      _
    $region35: #{_fused_block_call.1} parent=1 // pred_check_branch
      %1358 = sbr.rel (0) target = $region37
    $region36: #{_fused_block_call.1} parent=1 // pred_region
      %1359 = dma.done [#allocation4], 256
    $region37: #{_fused_block_call.1} parent=1 // pred_fallthru
      _
    %1360 = vsyncpa [#allocation3], 1
    %1361 = vsyncpa [#allocation4], 1

</llo_original>
